<compile_context>
chip_gen: v5e
topology: v5e:2x2
jax: 0.10.0
libtpu: 0.0.40
codegen_flags: <defaults>
</compile_context>

<pallas_src>
import functools
import math

import jax
import jax.numpy as jnp
from jax.experimental import pallas as pl
from jax.experimental.pallas import tpu as pltpu


_LN_EPS = 1e-5  # PyTorch nn.LayerNorm default (biased variance, eps=1e-5)


# ----------------------------- helpers -----------------------------

def _pick_bm(m, max_bm=512):
    """M-tile: whole M when small (single-TC friendly), else a divisor of M <= max_bm."""
    if m <= max_bm or m % 8 != 0:
        return m
    bm = max_bm - (max_bm % 8)
    while bm > 8 and m % bm != 0:
        bm -= 8
    return bm if m % bm == 0 else m


def _vmem_limit(*blocks):
    """Deliberate scoped-VMEM budget: 2x (double-buffer) each block + slack, clamped
    to [32 MiB, 64 MiB] so it is legal on v5e/v6e (128 MiB) and v7x (64 MiB)."""
    total = 0
    for shape, dtype in blocks:
        total += 2 * math.prod(shape) * jnp.dtype(dtype).itemsize
    return int(min(max(total + (2 << 20), 32 << 20), 64 << 20))


def _ln_f32(x, g, b, eps):
    mean = jnp.mean(x, axis=-1, keepdims=True)
    var = jnp.mean(jnp.square(x - mean), axis=-1, keepdims=True)
    return (x - mean) * jax.lax.rsqrt(var + eps) * g + b


def _gelu_tanh(x):
    # TODO(synk): PyTorch's default nn.GELU is exact erf; tanh approximation used
    # in-kernel (guaranteed Mosaic lowering), abs delta < ~3e-3.
    c = math.sqrt(2.0 / math.pi)
    return 0.5 * x * (1.0 + jnp.tanh(c * (x + 0.044715 * (x * x * x))))


_BF16 = jnp.bfloat16


# ----------------------------- Pallas kernels -----------------------------

def _layernorm_kernel(x_ref, g_ref, b_ref, o_ref, *, eps):
    x = x_ref[...].astype(jnp.float32)
    y = _ln_f32(x, g_ref[...].astype(jnp.float32), b_ref[...].astype(jnp.float32), eps)
    o_ref[...] = y.astype(o_ref.dtype)


def _prenorm_ffn_kernel(x_ref, g_ref, b_ref, w1_ref, b1_ref, w2_ref, b2_ref, o_ref,
                        *, eps, use_ln):
    """Fully-fused FFN on one M-tile: [LN ->] W1 -> +b1 -> GELU -> W2 -> +b2.
    The hidden activation lives only in VMEM/vregs (no HBM round trip)."""
    x = x_ref[...].astype(jnp.float32)
    if use_ln:
        x = _ln_f32(x, g_ref[...].astype(jnp.float32), b_ref[...].astype(jnp.float32), eps)
    h = jnp.dot(x.astype(_BF16), w1_ref[...], preferred_element_type=jnp.float32)
    h = _gelu_tanh(h + b1_ref[...].astype(jnp.float32))
    y = jnp.dot(h.astype(_BF16), w2_ref[...], preferred_element_type=jnp.float32)
    y = y + b2_ref[...].astype(jnp.float32)
    o_ref[...] = y.astype(o_ref.dtype)


def _prenorm_attn_kernel(x_ref, g_ref, b_ref, wqkv_ref, wo_ref, bo_ref, o_ref,
                         *, eps, heads, dim_head, scale, use_ln):
    """Fully-fused attention for one batch element:
    [LN ->] fused QKV matmul -> per-head softmax(QK^T)V -> head merge -> Wo (+bo).
    Output store is lane-dense (last dim = model dim)."""
    x = x_ref[0].astype(jnp.float32)                       # (N, D)
    if use_ln:
        x = _ln_f32(x, g_ref[...].astype(jnp.float32), b_ref[...].astype(jnp.float32), eps)
    qkv = jnp.dot(x.astype(_BF16), wqkv_ref[...],
                  preferred_element_type=jnp.float32)       # (N, 3*inner) f32
    inner = heads * dim_head

    head_outs = []
    for h in range(heads):                                  # static unrolled loop
        lo = h * dim_head
        q = qkv[:, lo:lo + dim_head]
        k = qkv[:, inner + lo:inner + lo + dim_head]
        v = qkv[:, 2 * inner + lo:2 * inner + lo + dim_head]
        # q k^T without an explicit transpose (contract on the last dims).
        s = jax.lax.dot_general(q.astype(_BF16), k.astype(_BF16),
                                (((1,), (1,)), ((), ())),
                                preferred_element_type=jnp.float32) * scale
        s = s - jnp.max(s, axis=-1, keepdims=True)
        e = jnp.exp(s)
        p = e * pl.reciprocal(jnp.sum(e, axis=-1, keepdims=True), approx=True)  # EUP slot
        head_outs.append(jnp.dot(p.astype(_BF16), v.astype(_BF16),
                                 preferred_element_type=jnp.float32))           # (N, Dh)

    o = jnp.concatenate(head_outs, axis=-1)                 # (N, inner) head merge in-kernel
    y = jnp.dot(o.astype(_BF16), wo_ref[...], preferred_element_type=jnp.float32)
    y = y + bo_ref[...].astype(jnp.float32)
    o_ref[0] = y.astype(o_ref.dtype)


# ----------------------------- kernel wrappers -----------------------------

def layernorm(x, g, b, eps=_LN_EPS):
    """Standalone tiled LayerNorm (used by PreNorm for a generic `fn`)."""
    D = x.shape[-1]
    lead = x.shape[:-1]
    x2 = x.reshape(-1, D)
    M = x2.shape[0]
    bm = _pick_bm(M)
    limit = _vmem_limit(((bm, D), x.dtype), ((bm, D), x.dtype))
    out = pl.pallas_call(
        functools.partial(_layernorm_kernel, eps=eps),
        grid=(M // bm,),
        in_specs=[pl.BlockSpec((bm, D), lambda i: (i, 0)),
                  pl.BlockSpec((1, D), lambda i: (0, 0)),
                  pl.BlockSpec((1, D), lambda i: (0, 0))],
        out_specs=pl.BlockSpec((bm, D), lambda i: (i, 0)),
        out_shape=jax.ShapeDtypeStruct((M, D), x.dtype),
        compiler_params=pltpu.CompilerParams(dimension_semantics=("parallel",),
                                             vmem_limit_bytes=limit),
    )(x2, g.reshape(1, D), b.reshape(1, D))
    return out.reshape(lead + (D,))


def prenorm_ffn(x, ln_g, ln_b, w1, b1, w2, b2, *, eps=_LN_EPS, use_ln=True):
    """One pallas_call per M-tile: LN + W1 + b1 + GELU + W2 + b2 fully fused."""
    D = x.shape[-1]
    Hd = w1.shape[1]
    lead = x.shape[:-1]
    x2 = x.reshape(-1, D)
    M = x2.shape[0]
    bm = _pick_bm(M)
    if ln_g is None:
        ln_g = jnp.ones((D,), jnp.float32)
        ln_b = jnp.zeros((D,), jnp.float32)
    limit = _vmem_limit(((bm, D), x.dtype), ((D, Hd), w1.dtype), ((Hd, D), w2.dtype),
                        ((bm, Hd), jnp.float32), ((bm, D), x.dtype))
    out = pl.pallas_call(
        functools.partial(_prenorm_ffn_kernel, eps=eps, use_ln=use_ln),
        grid=(M // bm,),
        in_specs=[pl.BlockSpec((bm, D), lambda i: (i, 0)),
                  pl.BlockSpec((1, D), lambda i: (0, 0)),
                  pl.BlockSpec((1, D), lambda i: (0, 0)),
                  pl.BlockSpec((D, Hd), lambda i: (0, 0)),
                  pl.BlockSpec((1, Hd), lambda i: (0, 0)),
                  pl.BlockSpec((Hd, D), lambda i: (0, 0)),
                  pl.BlockSpec((1, D), lambda i: (0, 0))],
        out_specs=pl.BlockSpec((bm, D), lambda i: (i, 0)),
        out_shape=jax.ShapeDtypeStruct((M, D), x.dtype),
        compiler_params=pltpu.CompilerParams(dimension_semantics=("parallel",),
                                             vmem_limit_bytes=limit),
    )(x2, ln_g.reshape(1, D), ln_b.reshape(1, D), w1, b1.reshape(1, Hd),
      w2, b2.reshape(1, D))
    return out.reshape(lead + (D,))


def prenorm_attention(x, ln_g, ln_b, wqkv, wo, bo, *, heads, dim_head, scale,
                      eps=_LN_EPS, use_ln=True):
    """One pallas_call per batch element: LN + QKV + attention + head-merge + Wo + bo."""
    B, N, D = x.shape
    inner = heads * dim_head
    if ln_g is None:
        ln_g = jnp.ones((D,), jnp.float32)
        ln_b = jnp.zeros((D,), jnp.float32)
    # TODO(synk): for large H*N (e.g. H=16, N=1024) split the grid over (B, H) with a
    # head-accumulated Wo to bound the per-step score temporary on v7x's 64 MiB VMEM.
    limit = _vmem_limit(((1, N, D), x.dtype), ((D, 3 * inner), wqkv.dtype),
                        ((inner, D), wo.dtype), ((N, 3 * inner), jnp.float32),
                        ((1, N, D), x.dtype))
    return pl.pallas_call(
        functools.partial(_prenorm_attn_kernel, eps=eps, heads=heads,
                          dim_head=dim_head, scale=scale, use_ln=use_ln),
        grid=(B,),
        in_specs=[pl.BlockSpec((1, N, D), lambda i: (i, 0, 0)),
                  pl.BlockSpec((1, D), lambda i: (0, 0)),
                  pl.BlockSpec((1, D), lambda i: (0, 0)),
                  pl.BlockSpec((D, 3 * inner), lambda i: (0, 0)),
                  pl.BlockSpec((inner, D), lambda i: (0, 0)),
                  pl.BlockSpec((1, D), lambda i: (0, 0))],
        out_specs=pl.BlockSpec((1, N, D), lambda i: (i, 0, 0)),
        out_shape=jax.ShapeDtypeStruct((B, N, D), x.dtype),
        compiler_params=pltpu.CompilerParams(dimension_semantics=("parallel",),
                                             vmem_limit_bytes=limit),
    )(x, ln_g.reshape(1, D), ln_b.reshape(1, D), wqkv, wo, bo.reshape(1, D))


# ----------------------------- fn modules wrapped by PreNorm -----------------------------

class FeedForward:
    """ViT FFN: Linear -> GELU -> Linear, fully fused in one kernel (bf16 weights)."""

    def __init__(self, dim, hidden_dim, key):
        k1, k2, k3, k4 = jax.random.split(key, 4)
        self.w1 = (0.05 * jax.random.normal(k1, (dim, hidden_dim), jnp.float32)).astype(_BF16)
        self.b1 = 0.02 * jax.random.normal(k3, (hidden_dim,), jnp.float32)
        self.w2 = (0.05 * jax.random.normal(k2, (hidden_dim, dim), jnp.float32)).astype(_BF16)
        self.b2 = 0.02 * jax.random.normal(k4, (dim,), jnp.float32)

    def __call__(self, x):
        return prenorm_ffn(x, None, None, self.w1, self.b1, self.w2, self.b2, use_ln=False)

    def fused_prenorm(self, x, ln_g, ln_b):
        return prenorm_ffn(x, ln_g, ln_b, self.w1, self.b1, self.w2, self.b2, use_ln=True)


class Attention:
    """ViT self-attention: fused QKV (bias-free), per-head cores, head merge + output
    projection all inside one kernel (bf16 weights)."""

    def __init__(self, dim, heads, dim_head, key):
        inner = heads * dim_head
        self.heads, self.dim_head = heads, dim_head
        self.scale = float(dim_head) ** -0.5
        k1, k2, k3 = jax.random.split(key, 3)
        self.wqkv = (0.05 * jax.random.normal(k1, (dim, 3 * inner), jnp.float32)).astype(_BF16)
        self.wo = (0.05 * jax.random.normal(k2, (inner, dim), jnp.float32)).astype(_BF16)
        self.bo = 0.02 * jax.random.normal(k3, (dim,), jnp.float32)

    def __call__(self, x):
        return prenorm_attention(x, None, None, self.wqkv, self.wo, self.bo,
                                 heads=self.heads, dim_head=self.dim_head,
                                 scale=self.scale, use_ln=False)

    def fused_prenorm(self, x, ln_g, ln_b):
        return prenorm_attention(x, ln_g, ln_b, self.wqkv, self.wo, self.bo,
                                 heads=self.heads, dim_head=self.dim_head,
                                 scale=self.scale, use_ln=True)


class PreNorm:
    """Mirror of the PyTorch module: forward(x, **kw) = fn(LayerNorm(x), **kw).

    If `fn` exposes `fused_prenorm`, the LayerNorm is fused into fn's kernel (single
    pallas_call); otherwise the standalone tiled LayerNorm kernel runs first."""

    def __init__(self, dim, fn, key):
        kg, kb = jax.random.split(key)
        # Non-trivial affine so the fused LN path is genuinely exercised.
        self.g = 1.0 + 0.1 * jax.random.normal(kg, (dim,), jnp.float32)
        self.b = 0.1 * jax.random.normal(kb, (dim,), jnp.float32)
        self.fn = fn

    def __call__(self, x, **kwargs):
        if hasattr(self.fn, "fused_prenorm"):
            return self.fn.fused_prenorm(x, self.g, self.b, **kwargs)
        return self.fn(layernorm(x, self.g, self.b), **kwargs)


# ----------------------------- pure-JAX references -----------------------------

_HI = jax.lax.Precision.HIGHEST


def ref_layernorm(x, g, b, eps=_LN_EPS):
    mean = x.mean(-1, keepdims=True)
    var = jnp.square(x - mean).mean(-1, keepdims=True)
    return (x - mean) / jnp.sqrt(var + eps) * g + b


def ref_gelu_tanh(x):
    c = math.sqrt(2.0 / math.pi)
    return 0.5 * x * (1.0 + jnp.tanh(c * (x + 0.044715 * x ** 3)))


def ref_ffn(x, ff):
    h = ref_gelu_tanh(jnp.dot(x, ff.w1.astype(jnp.float32), precision=_HI) + ff.b1)
    return jnp.dot(h, ff.w2.astype(jnp.float32), precision=_HI) + ff.b2


def ref_attention(x, attn):
    inner = attn.heads * attn.dim_head
    qkv = jnp.dot(x, attn.wqkv.astype(jnp.float32), precision=_HI)
    outs = []
    for h in range(attn.heads):
        lo = h * attn.dim_head
        q = qkv[..., lo:lo + attn.dim_head]
        k = qkv[..., inner + lo:inner + lo + attn.dim_head]
        v = qkv[..., 2 * inner + lo:2 * inner + lo + attn.dim_head]
        s = jnp.einsum('bqd,bkd->bqk', q, k, precision=_HI) * attn.scale
        p = jax.nn.softmax(s, axis=-1)
        outs.append(jnp.einsum('bqk,bkd->bqd', p, v, precision=_HI))
    o = jnp.concatenate(outs, axis=-1)
    return jnp.dot(o, attn.wo.astype(jnp.float32), precision=_HI) + attn.bo


# ----------------------------- main -----------------------------

if __name__ == "__main__":
    B, N_TOK, DIM = 2, 16, 128          # lane-dense feature dims (multiples of 128)
    HEADS, DIM_HEAD, MLP = 2, 64, 256

    root = jax.random.PRNGKey(0)
    kx, kff, kattn, kp1, kp2, kp3 = jax.random.split(root, 6)
    x = jax.random.normal(kx, (B, N_TOK, DIM), dtype=jnp.float32)

    pre_ffn = PreNorm(DIM, FeedForward(DIM, MLP, kff), kp1)               # PreNorm(FeedForward)
    pre_attn = PreNorm(DIM, Attention(DIM, HEADS, DIM_HEAD, kattn), kp2)  # PreNorm(Attention)
    pre_generic = PreNorm(DIM, jnp.tanh, kp3)                             # generic fn path

    @jax.jit
    def forward(inp):
        return pre_ffn(inp), pre_attn(inp), pre_generic(inp)

    y_ffn, y_attn, y_gen = jax.block_until_ready(forward(x))

    r_ffn = ref_ffn(ref_layernorm(x, pre_ffn.g, pre_ffn.b), pre_ffn.fn)
    r_attn = ref_attention(ref_layernorm(x, pre_attn.g, pre_attn.b), pre_attn.fn)
    r_gen = jnp.tanh(ref_layernorm(x, pre_generic.g, pre_generic.b))

    # Looser tolerance on the matmul paths covers bf16 MXU operands + the approx EUP
    # reciprocal in the softmax; tight tolerance for the matmul-free generic path.
    checks = ((y_ffn, r_ffn, 2.5e-2), (y_attn, r_attn, 2.5e-2), (y_gen, r_gen, 1e-3))
    for got, want, tol in checks:
        assert got.shape == (B, N_TOK, DIM), got.shape
        assert bool(jnp.all(jnp.isfinite(got)))
        assert bool(jnp.allclose(got, want, atol=tol, rtol=tol)), \
            float(jnp.max(jnp.abs(got - want)))

    print("KERNEL_OK")
</pallas_src>

<mosaic_0001>
module attributes {stable_mosaic.version = 11 : i64} {
  func.func @_prenorm_ffn_kernel(%arg0: i32, %arg1: memref<32x128xf32, #tpu.memory_space<vmem>>, %arg2: memref<1x128xf32, #tpu.memory_space<vmem>>, %arg3: memref<1x128xf32, #tpu.memory_space<vmem>>, %arg4: memref<128x256xbf16, #tpu.memory_space<vmem>>, %arg5: memref<1x256xf32, #tpu.memory_space<vmem>>, %arg6: memref<256x128xbf16, #tpu.memory_space<vmem>>, %arg7: memref<1x128xf32, #tpu.memory_space<vmem>>, %arg8: memref<32x128xf32, #tpu.memory_space<vmem>>) attributes {dimension_semantics = [#tpu.dimension_semantics<parallel>], iteration_bounds = array<i64: 1>, scalar_prefetch = 0 : i64, scratch_operands = 0 : i64, tpu.core_type = #tpu.core_type<tc>, window_params = [{transform_indices = @transform_0, window_bounds = array<i64: 32, 128>}, {pipeline_mode = #tpu.pipeline_mode<synchronous>, transform_indices = @transform_1, window_bounds = array<i64: 1, 128>}, {pipeline_mode = #tpu.pipeline_mode<synchronous>, transform_indices = @transform_2, window_bounds = array<i64: 1, 128>}, {pipeline_mode = #tpu.pipeline_mode<synchronous>, transform_indices = @transform_3, window_bounds = array<i64: 128, 256>}, {pipeline_mode = #tpu.pipeline_mode<synchronous>, transform_indices = @transform_4, window_bounds = array<i64: 1, 256>}, {pipeline_mode = #tpu.pipeline_mode<synchronous>, transform_indices = @transform_5, window_bounds = array<i64: 256, 128>}, {pipeline_mode = #tpu.pipeline_mode<synchronous>, transform_indices = @transform_6, window_bounds = array<i64: 1, 128>}, {transform_indices = @transform_7, window_bounds = array<i64: 32, 128>}]} {
    %c0 = arith.constant 0 : index
    %c0_0 = arith.constant 0 : index
    %0 = vector.load %arg1[%c0, %c0_0] : memref<32x128xf32, #tpu.memory_space<vmem>>, vector<32x128xf32>
    %c0_1 = arith.constant 0 : index
    %c0_2 = arith.constant 0 : index
    %1 = vector.load %arg2[%c0_1, %c0_2] : memref<1x128xf32, #tpu.memory_space<vmem>>, vector<1x128xf32>
    %c0_3 = arith.constant 0 : index
    %c0_4 = arith.constant 0 : index
    %2 = vector.load %arg3[%c0_3, %c0_4] : memref<1x128xf32, #tpu.memory_space<vmem>>, vector<1x128xf32>
    %cst = arith.constant dense<0.000000e+00> : vector<32xf32>
    %3 = vector.multi_reduction <add>, %0, %cst [1] : vector<32x128xf32> to vector<32xf32>
    %4 = vector.shape_cast %3 : vector<32xf32> to vector<32x1xf32>
    %cst_5 = arith.constant 1.280000e+02 : f32
    %5 = vector.broadcast %cst_5 : f32 to vector<32x1xf32>
    %6 = arith.divf %4, %5 : vector<32x1xf32>
    %7 = vector.broadcast %6 : vector<32x1xf32> to vector<32x128xf32>
    %8 = arith.subf %0, %7 : vector<32x128xf32>
    %9 = arith.mulf %8, %8 : vector<32x128xf32>
    %cst_6 = arith.constant dense<0.000000e+00> : vector<32xf32>
    %10 = vector.multi_reduction <add>, %9, %cst_6 [1] : vector<32x128xf32> to vector<32xf32>
    %11 = vector.shape_cast %10 : vector<32xf32> to vector<32x1xf32>
    %cst_7 = arith.constant 1.280000e+02 : f32
    %12 = vector.broadcast %cst_7 : f32 to vector<32x1xf32>
    %13 = arith.divf %11, %12 : vector<32x1xf32>
    %14 = vector.broadcast %6 : vector<32x1xf32> to vector<32x128xf32>
    %15 = arith.subf %0, %14 : vector<32x128xf32>
    %cst_8 = arith.constant 9.99999974E-6 : f32
    %16 = vector.broadcast %cst_8 : f32 to vector<32x1xf32>
    %17 = arith.addf %13, %16 : vector<32x1xf32>
    %18 = math.rsqrt %17 : vector<32x1xf32>
    %19 = vector.broadcast %18 : vector<32x1xf32> to vector<32x128xf32>
    %20 = arith.mulf %15, %19 : vector<32x128xf32>
    %21 = vector.broadcast %1 : vector<1x128xf32> to vector<32x128xf32>
    %22 = arith.mulf %20, %21 : vector<32x128xf32>
    %23 = vector.broadcast %2 : vector<1x128xf32> to vector<32x128xf32>
    %24 = arith.addf %22, %23 : vector<32x128xf32>
    %25 = arith.truncf %24 : vector<32x128xf32> to vector<32x128xbf16>
    %c0_9 = arith.constant 0 : index
    %c0_10 = arith.constant 0 : index
    %26 = vector.load %arg4[%c0_9, %c0_10] : memref<128x256xbf16, #tpu.memory_space<vmem>>, vector<128x256xbf16>
    %cst_11 = arith.constant dense<0.000000e+00> : vector<32x256xf32>
    %27 = tpu.matmul %25, %26, %cst_11 {dimension_numbers = #tpu.dot_dimension_numbers<[1], [0], [0], [1], [0, 0, 1, 1], [], []>} : vector<32x128xbf16>, vector<128x256xbf16>, vector<32x256xf32> -> vector<32x256xf32>
    %c0_12 = arith.constant 0 : index
    %c0_13 = arith.constant 0 : index
    %28 = vector.load %arg5[%c0_12, %c0_13] : memref<1x256xf32, #tpu.memory_space<vmem>>, vector<1x256xf32>
    %29 = vector.broadcast %28 : vector<1x256xf32> to vector<32x256xf32>
    %30 = arith.addf %27, %29 : vector<32x256xf32>
    %cst_14 = arith.constant 5.000000e-01 : f32
    %31 = vector.broadcast %cst_14 : f32 to vector<32x256xf32>
    %32 = arith.mulf %31, %30 : vector<32x256xf32>
    %33 = arith.mulf %30, %30 : vector<32x256xf32>
    %34 = arith.mulf %33, %30 : vector<32x256xf32>
    %cst_15 = arith.constant 4.471500e-02 : f32
    %35 = vector.broadcast %cst_15 : f32 to vector<32x256xf32>
    %36 = arith.mulf %35, %34 : vector<32x256xf32>
    %37 = arith.addf %30, %36 : vector<32x256xf32>
    %cst_16 = arith.constant 0.797884583 : f32
    %38 = vector.broadcast %cst_16 : f32 to vector<32x256xf32>
    %39 = arith.mulf %38, %37 : vector<32x256xf32>
    %40 = math.tanh %39 : vector<32x256xf32>
    %cst_17 = arith.constant 1.000000e+00 : f32
    %41 = vector.broadcast %cst_17 : f32 to vector<32x256xf32>
    %42 = arith.addf %41, %40 : vector<32x256xf32>
    %43 = arith.mulf %32, %42 : vector<32x256xf32>
    %44 = arith.truncf %43 : vector<32x256xf32> to vector<32x256xbf16>
    %c0_18 = arith.constant 0 : index
    %c0_19 = arith.constant 0 : index
    %45 = vector.load %arg6[%c0_18, %c0_19] : memref<256x128xbf16, #tpu.memory_space<vmem>>, vector<256x128xbf16>
    %cst_20 = arith.constant dense<0.000000e+00> : vector<32x128xf32>
    %46 = tpu.matmul %44, %45, %cst_20 {dimension_numbers = #tpu.dot_dimension_numbers<[1], [0], [0], [1], [0, 0, 1, 1], [], []>} : vector<32x256xbf16>, vector<256x128xbf16>, vector<32x128xf32> -> vector<32x128xf32>
    %c0_21 = arith.constant 0 : index
    %c0_22 = arith.constant 0 : index
    %47 = vector.load %arg7[%c0_21, %c0_22] : memref<1x128xf32, #tpu.memory_space<vmem>>, vector<1x128xf32>
    %48 = vector.broadcast %47 : vector<1x128xf32> to vector<32x128xf32>
    %49 = arith.addf %46, %48 : vector<32x128xf32>
    %c0_23 = arith.constant 0 : index
    %c0_24 = arith.constant 0 : index
    %50 = vector.load %arg8[%c0_23, %c0_24] : memref<32x128xf32, #tpu.memory_space<vmem>>, vector<32x128xf32>
    tpu.vector_store %arg8[%c0_23, %c0_24], %49 {strides = array<i32>} : memref<32x128xf32, #tpu.memory_space<vmem>>, vector<32x128xf32>,
    return
  }
  func.func @transform_0(%arg0: i32) -> (i32, i32) {
    %c0_i32 = arith.constant 0 : i32
    %c0_i32_0 = arith.constant 0 : i32
    return %arg0, %c0_i32 : i32, i32
  }
  func.func @transform_1(%arg0: i32) -> (i32, i32) {
    %c0_i32 = arith.constant 0 : i32
    %c0_i32_0 = arith.constant 0 : i32
    %c0_i32_1 = arith.constant 0 : i32
    return %c0_i32, %c0_i32_0 : i32, i32
  }
  func.func @transform_2(%arg0: i32) -> (i32, i32) {
    %c0_i32 = arith.constant 0 : i32
    %c0_i32_0 = arith.constant 0 : i32
    %c0_i32_1 = arith.constant 0 : i32
    return %c0_i32, %c0_i32_0 : i32, i32
  }
  func.func @transform_3(%arg0: i32) -> (i32, i32) {
    %c0_i32 = arith.constant 0 : i32
    %c0_i32_0 = arith.constant 0 : i32
    %c0_i32_1 = arith.constant 0 : i32
    return %c0_i32, %c0_i32_0 : i32, i32
  }
  func.func @transform_4(%arg0: i32) -> (i32, i32) {
    %c0_i32 = arith.constant 0 : i32
    %c0_i32_0 = arith.constant 0 : i32
    %c0_i32_1 = arith.constant 0 : i32
    return %c0_i32, %c0_i32_0 : i32, i32
  }
  func.func @transform_5(%arg0: i32) -> (i32, i32) {
    %c0_i32 = arith.constant 0 : i32
    %c0_i32_0 = arith.constant 0 : i32
    %c0_i32_1 = arith.constant 0 : i32
    return %c0_i32, %c0_i32_0 : i32, i32
  }
  func.func @transform_6(%arg0: i32) -> (i32, i32) {
    %c0_i32 = arith.constant 0 : i32
    %c0_i32_0 = arith.constant 0 : i32
    %c0_i32_1 = arith.constant 0 : i32
    return %c0_i32, %c0_i32_0 : i32, i32
  }
  func.func @transform_7(%arg0: i32) -> (i32, i32) {
    %c0_i32 = arith.constant 0 : i32
    %c0_i32_0 = arith.constant 0 : i32
    return %arg0, %c0_i32 : i32, i32
  }
}

module attributes {stable_mosaic.version = 11 : i64} {
  func.func @_prenorm_attn_kernel(%arg0: i32, %arg1: memref<1x16x128xf32, #tpu.memory_space<vmem>>, %arg2: memref<1x128xf32, #tpu.memory_space<vmem>>, %arg3: memref<1x128xf32, #tpu.memory_space<vmem>>, %arg4: memref<128x384xbf16, #tpu.memory_space<vmem>>, %arg5: memref<128x128xbf16, #tpu.memory_space<vmem>>, %arg6: memref<1x128xf32, #tpu.memory_space<vmem>>, %arg7: memref<1x16x128xf32, #tpu.memory_space<vmem>>) attributes {dimension_semantics = [#tpu.dimension_semantics<parallel>], iteration_bounds = array<i64: 2>, scalar_prefetch = 0 : i64, scratch_operands = 0 : i64, tpu.core_type = #tpu.core_type<tc>, window_params = [{transform_indices = @transform_0, window_bounds = array<i64: 1, 16, 128>}, {pipeline_mode = #tpu.pipeline_mode<synchronous>, transform_indices = @transform_1, window_bounds = array<i64: 1, 128>}, {pipeline_mode = #tpu.pipeline_mode<synchronous>, transform_indices = @transform_2, window_bounds = array<i64: 1, 128>}, {pipeline_mode = #tpu.pipeline_mode<synchronous>, transform_indices = @transform_3, window_bounds = array<i64: 128, 384>}, {pipeline_mode = #tpu.pipeline_mode<synchronous>, transform_indices = @transform_4, window_bounds = array<i64: 128, 128>}, {pipeline_mode = #tpu.pipeline_mode<synchronous>, transform_indices = @transform_5, window_bounds = array<i64: 1, 128>}, {transform_indices = @transform_6, window_bounds = array<i64: 1, 16, 128>}]} {
    %c0 = arith.constant 0 : index
    %c0_0 = arith.constant 0 : index
    %c0_1 = arith.constant 0 : index
    %0 = vector.load %arg1[%c0, %c0_0, %c0_1] : memref<1x16x128xf32, #tpu.memory_space<vmem>>, vector<1x16x128xf32>
    %1 = vector.shape_cast %0 : vector<1x16x128xf32> to vector<16x128xf32>
    %c0_2 = arith.constant 0 : index
    %c0_3 = arith.constant 0 : index
    %2 = vector.load %arg2[%c0_2, %c0_3] : memref<1x128xf32, #tpu.memory_space<vmem>>, vector<1x128xf32>
    %c0_4 = arith.constant 0 : index
    %c0_5 = arith.constant 0 : index
    %3 = vector.load %arg3[%c0_4, %c0_5] : memref<1x128xf32, #tpu.memory_space<vmem>>, vector<1x128xf32>
    %cst = arith.constant dense<0.000000e+00> : vector<16xf32>
    %4 = vector.multi_reduction <add>, %1, %cst [1] : vector<16x128xf32> to vector<16xf32>
    %5 = vector.shape_cast %4 : vector<16xf32> to vector<16x1xf32>
    %cst_6 = arith.constant 1.280000e+02 : f32
    %6 = vector.broadcast %cst_6 : f32 to vector<16x1xf32>
    %7 = arith.divf %5, %6 : vector<16x1xf32>
    %8 = vector.broadcast %7 : vector<16x1xf32> to vector<16x128xf32>
    %9 = arith.subf %1, %8 : vector<16x128xf32>
    %10 = arith.mulf %9, %9 : vector<16x128xf32>
    %cst_7 = arith.constant dense<0.000000e+00> : vector<16xf32>
    %11 = vector.multi_reduction <add>, %10, %cst_7 [1] : vector<16x128xf32> to vector<16xf32>
    %12 = vector.shape_cast %11 : vector<16xf32> to vector<16x1xf32>
    %cst_8 = arith.constant 1.280000e+02 : f32
    %13 = vector.broadcast %cst_8 : f32 to vector<16x1xf32>
    %14 = arith.divf %12, %13 : vector<16x1xf32>
    %15 = vector.broadcast %7 : vector<16x1xf32> to vector<16x128xf32>
    %16 = arith.subf %1, %15 : vector<16x128xf32>
    %cst_9 = arith.constant 9.99999974E-6 : f32
    %17 = vector.broadcast %cst_9 : f32 to vector<16x1xf32>
    %18 = arith.addf %14, %17 : vector<16x1xf32>
    %19 = math.rsqrt %18 : vector<16x1xf32>
    %20 = vector.broadcast %19 : vector<16x1xf32> to vector<16x128xf32>
    %21 = arith.mulf %16, %20 : vector<16x128xf32>
    %22 = vector.broadcast %2 : vector<1x128xf32> to vector<16x128xf32>
    %23 = arith.mulf %21, %22 : vector<16x128xf32>
    %24 = vector.broadcast %3 : vector<1x128xf32> to vector<16x128xf32>
    %25 = arith.addf %23, %24 : vector<16x128xf32>
    %26 = arith.truncf %25 : vector<16x128xf32> to vector<16x128xbf16>
    %c0_10 = arith.constant 0 : index
    %c0_11 = arith.constant 0 : index
    %27 = vector.load %arg4[%c0_10, %c0_11] : memref<128x384xbf16, #tpu.memory_space<vmem>>, vector<128x384xbf16>
    %cst_12 = arith.constant dense<0.000000e+00> : vector<16x384xf32>
    %28 = tpu.matmul %26, %27, %cst_12 {dimension_numbers = #tpu.dot_dimension_numbers<[1], [0], [0], [1], [0, 0, 1, 1], [], []>} : vector<16x128xbf16>, vector<128x384xbf16>, vector<16x384xf32> -> vector<16x384xf32>
    %29 = vector.extract_strided_slice %28 {offsets = [0, 0], sizes = [16, 64], strides = [1, 1]} : vector<16x384xf32> to vector<16x64xf32>
    %30 = vector.extract_strided_slice %28 {offsets = [0, 128], sizes = [16, 64], strides = [1, 1]} : vector<16x384xf32> to vector<16x64xf32>
    %31 = vector.extract_strided_slice %28 {offsets = [0, 256], sizes = [16, 64], strides = [1, 1]} : vector<16x384xf32> to vector<16x64xf32>
    %32 = arith.truncf %29 : vector<16x64xf32> to vector<16x64xbf16>
    %33 = arith.truncf %30 : vector<16x64xf32> to vector<16x64xbf16>
    %cst_13 = arith.constant dense<0.000000e+00> : vector<16x16xf32>
    %34 = tpu.matmul %32, %33, %cst_13 {dimension_numbers = #tpu.dot_dimension_numbers<[1], [1], [0], [0], [0, 0, 1, 0], [], []>} : vector<16x64xbf16>, vector<16x64xbf16>, vector<16x16xf32> -> vector<16x16xf32>
    %cst_14 = arith.constant 1.250000e-01 : f32
    %35 = vector.broadcast %cst_14 : f32 to vector<16x16xf32>
    %36 = arith.mulf %34, %35 : vector<16x16xf32>
    %cst_15 = arith.constant dense<0xFF800000> : vector<16xf32>
    %37 = vector.multi_reduction <maximumf>, %36, %cst_15 [1] : vector<16x16xf32> to vector<16xf32>
    %38 = vector.shape_cast %37 : vector<16xf32> to vector<16x1xf32>
    %39 = vector.broadcast %38 : vector<16x1xf32> to vector<16x16xf32>
    %40 = arith.subf %36, %39 : vector<16x16xf32>
    %41 = math.exp %40 : vector<16x16xf32>
    %cst_16 = arith.constant dense<0.000000e+00> : vector<16xf32>
    %42 = vector.multi_reduction <add>, %41, %cst_16 [1] : vector<16x16xf32> to vector<16xf32>
    %43 = vector.shape_cast %42 : vector<16xf32> to vector<16x1xf32>
    %44 = tpu.reciprocal %43 {approx = true} : vector<16x1xf32> -> vector<16x1xf32>
    %45 = vector.broadcast %44 : vector<16x1xf32> to vector<16x16xf32>
    %46 = arith.mulf %41, %45 : vector<16x16xf32>
    %47 = arith.truncf %46 : vector<16x16xf32> to vector<16x16xbf16>
    %48 = arith.truncf %31 : vector<16x64xf32> to vector<16x64xbf16>
    %cst_17 = arith.constant dense<0.000000e+00> : vector<16x64xf32>
    %49 = tpu.matmul %47, %48, %cst_17 {dimension_numbers = #tpu.dot_dimension_numbers<[1], [0], [0], [1], [0, 0, 1, 1], [], []>} : vector<16x16xbf16>, vector<16x64xbf16>, vector<16x64xf32> -> vector<16x64xf32>
    %50 = vector.extract_strided_slice %28 {offsets = [0, 64], sizes = [16, 64], strides = [1, 1]} : vector<16x384xf32> to vector<16x64xf32>
    %51 = vector.extract_strided_slice %28 {offsets = [0, 192], sizes = [16, 64], strides = [1, 1]} : vector<16x384xf32> to vector<16x64xf32>
    %52 = vector.extract_strided_slice %28 {offsets = [0, 320], sizes = [16, 64], strides = [1, 1]} : vector<16x384xf32> to vector<16x64xf32>
    %53 = arith.truncf %50 : vector<16x64xf32> to vector<16x64xbf16>
    %54 = arith.truncf %51 : vector<16x64xf32> to vector<16x64xbf16>
    %cst_18 = arith.constant dense<0.000000e+00> : vector<16x16xf32>
    %55 = tpu.matmul %53, %54, %cst_18 {dimension_numbers = #tpu.dot_dimension_numbers<[1], [1], [0], [0], [0, 0, 1, 0], [], []>} : vector<16x64xbf16>, vector<16x64xbf16>, vector<16x16xf32> -> vector<16x16xf32>
    %cst_19 = arith.constant 1.250000e-01 : f32
    %56 = vector.broadcast %cst_19 : f32 to vector<16x16xf32>
    %57 = arith.mulf %55, %56 : vector<16x16xf32>
    %cst_20 = arith.constant dense<0xFF800000> : vector<16xf32>
    %58 = vector.multi_reduction <maximumf>, %57, %cst_20 [1] : vector<16x16xf32> to vector<16xf32>
    %59 = vector.shape_cast %58 : vector<16xf32> to vector<16x1xf32>
    %60 = vector.broadcast %59 : vector<16x1xf32> to vector<16x16xf32>
    %61 = arith.subf %57, %60 : vector<16x16xf32>
    %62 = math.exp %61 : vector<16x16xf32>
    %cst_21 = arith.constant dense<0.000000e+00> : vector<16xf32>
    %63 = vector.multi_reduction <add>, %62, %cst_21 [1] : vector<16x16xf32> to vector<16xf32>
    %64 = vector.shape_cast %63 : vector<16xf32> to vector<16x1xf32>
    %65 = tpu.reciprocal %64 {approx = true} : vector<16x1xf32> -> vector<16x1xf32>
    %66 = vector.broadcast %65 : vector<16x1xf32> to vector<16x16xf32>
    %67 = arith.mulf %62, %66 : vector<16x16xf32>
    %68 = arith.truncf %67 : vector<16x16xf32> to vector<16x16xbf16>
    %69 = arith.truncf %52 : vector<16x64xf32> to vector<16x64xbf16>
    %cst_22 = arith.constant dense<0.000000e+00> : vector<16x64xf32>
    %70 = tpu.matmul %68, %69, %cst_22 {dimension_numbers = #tpu.dot_dimension_numbers<[1], [0], [0], [1], [0, 0, 1, 1], [], []>} : vector<16x16xbf16>, vector<16x64xbf16>, vector<16x64xf32> -> vector<16x64xf32>
    %71 = tpu.concatenate %49, %70 in 1 : vector<16x64xf32>, vector<16x64xf32> -> vector<16x128xf32>
    %72 = arith.truncf %71 : vector<16x128xf32> to vector<16x128xbf16>
    %c0_23 = arith.constant 0 : index
    %c0_24 = arith.constant 0 : index
    %73 = vector.load %arg5[%c0_23, %c0_24] : memref<128x128xbf16, #tpu.memory_space<vmem>>, vector<128x128xbf16>
    %cst_25 = arith.constant dense<0.000000e+00> : vector<16x128xf32>
    %74 = tpu.matmul %72, %73, %cst_25 {dimension_numbers = #tpu.dot_dimension_numbers<[1], [0], [0], [1], [0, 0, 1, 1], [], []>} : vector<16x128xbf16>, vector<128x128xbf16>, vector<16x128xf32> -> vector<16x128xf32>
    %c0_26 = arith.constant 0 : index
    %c0_27 = arith.constant 0 : index
    %75 = vector.load %arg6[%c0_26, %c0_27] : memref<1x128xf32, #tpu.memory_space<vmem>>, vector<1x128xf32>
    %76 = vector.broadcast %75 : vector<1x128xf32> to vector<16x128xf32>
    %77 = arith.addf %74, %76 : vector<16x128xf32>
    %c0_28 = arith.constant 0 : index
    %c0_29 = arith.constant 0 : index
    %c0_30 = arith.constant 0 : index
    %78 = vector.load %arg7[%c0_28, %c0_29, %c0_30] : memref<1x16x128xf32, #tpu.memory_space<vmem>>, vector<1x16x128xf32>
    %79 = vector.shape_cast %78 : vector<1x16x128xf32> to vector<16x128xf32>
    %80 = vector.shape_cast %77 : vector<16x128xf32> to vector<1x16x128xf32>
    tpu.vector_store %arg7[%c0_28, %c0_29, %c0_30], %80 {strides = array<i32>} : memref<1x16x128xf32, #tpu.memory_space<vmem>>, vector<1x16x128xf32>,
    return
  }
  func.func @transform_0(%arg0: i32) -> (i32, i32, i32) {
    %c0_i32 = arith.constant 0 : i32
    %c0_i32_0 = arith.constant 0 : i32
    %c0_i32_1 = arith.constant 0 : i32
    return %arg0, %c0_i32, %c0_i32_0 : i32, i32, i32
  }
  func.func @transform_1(%arg0: i32) -> (i32, i32) {
    %c0_i32 = arith.constant 0 : i32
    %c0_i32_0 = arith.constant 0 : i32
    %c0_i32_1 = arith.constant 0 : i32
    return %c0_i32, %c0_i32_0 : i32, i32
  }
  func.func @transform_2(%arg0: i32) -> (i32, i32) {
    %c0_i32 = arith.constant 0 : i32
    %c0_i32_0 = arith.constant 0 : i32
    %c0_i32_1 = arith.constant 0 : i32
    return %c0_i32, %c0_i32_0 : i32, i32
  }
  func.func @transform_3(%arg0: i32) -> (i32, i32) {
    %c0_i32 = arith.constant 0 : i32
    %c0_i32_0 = arith.constant 0 : i32
    %c0_i32_1 = arith.constant 0 : i32
    return %c0_i32, %c0_i32_0 : i32, i32
  }
  func.func @transform_4(%arg0: i32) -> (i32, i32) {
    %c0_i32 = arith.constant 0 : i32
    %c0_i32_0 = arith.constant 0 : i32
    %c0_i32_1 = arith.constant 0 : i32
    return %c0_i32, %c0_i32_0 : i32, i32
  }
  func.func @transform_5(%arg0: i32) -> (i32, i32) {
    %c0_i32 = arith.constant 0 : i32
    %c0_i32_0 = arith.constant 0 : i32
    %c0_i32_1 = arith.constant 0 : i32
    return %c0_i32, %c0_i32_0 : i32, i32
  }
  func.func @transform_6(%arg0: i32) -> (i32, i32, i32) {
    %c0_i32 = arith.constant 0 : i32
    %c0_i32_0 = arith.constant 0 : i32
    %c0_i32_1 = arith.constant 0 : i32
    return %arg0, %c0_i32, %c0_i32_0 : i32, i32, i32
  }
}

module attributes {stable_mosaic.version = 11 : i64} {
  func.func @_layernorm_kernel(%arg0: i32, %arg1: memref<32x128xf32, #tpu.memory_space<vmem>>, %arg2: memref<1x128xf32, #tpu.memory_space<vmem>>, %arg3: memref<1x128xf32, #tpu.memory_space<vmem>>, %arg4: memref<32x128xf32, #tpu.memory_space<vmem>>) attributes {dimension_semantics = [#tpu.dimension_semantics<parallel>], iteration_bounds = array<i64: 1>, scalar_prefetch = 0 : i64, scratch_operands = 0 : i64, tpu.core_type = #tpu.core_type<tc>, window_params = [{transform_indices = @transform_0, window_bounds = array<i64: 32, 128>}, {pipeline_mode = #tpu.pipeline_mode<synchronous>, transform_indices = @transform_1, window_bounds = array<i64: 1, 128>}, {pipeline_mode = #tpu.pipeline_mode<synchronous>, transform_indices = @transform_2, window_bounds = array<i64: 1, 128>}, {transform_indices = @transform_3, window_bounds = array<i64: 32, 128>}]} {
    %c0 = arith.constant 0 : index
    %c0_0 = arith.constant 0 : index
    %0 = vector.load %arg1[%c0, %c0_0] : memref<32x128xf32, #tpu.memory_space<vmem>>, vector<32x128xf32>
    %c0_1 = arith.constant 0 : index
    %c0_2 = arith.constant 0 : index
    %1 = vector.load %arg2[%c0_1, %c0_2] : memref<1x128xf32, #tpu.memory_space<vmem>>, vector<1x128xf32>
    %c0_3 = arith.constant 0 : index
    %c0_4 = arith.constant 0 : index
    %2 = vector.load %arg3[%c0_3, %c0_4] : memref<1x128xf32, #tpu.memory_space<vmem>>, vector<1x128xf32>
    %cst = arith.constant dense<0.000000e+00> : vector<32xf32>
    %3 = vector.multi_reduction <add>, %0, %cst [1] : vector<32x128xf32> to vector<32xf32>
    %4 = vector.shape_cast %3 : vector<32xf32> to vector<32x1xf32>
    %cst_5 = arith.constant 1.280000e+02 : f32
    %5 = vector.broadcast %cst_5 : f32 to vector<32x1xf32>
    %6 = arith.divf %4, %5 : vector<32x1xf32>
    %7 = vector.broadcast %6 : vector<32x1xf32> to vector<32x128xf32>
    %8 = arith.subf %0, %7 : vector<32x128xf32>
    %9 = arith.mulf %8, %8 : vector<32x128xf32>
    %cst_6 = arith.constant dense<0.000000e+00> : vector<32xf32>
    %10 = vector.multi_reduction <add>, %9, %cst_6 [1] : vector<32x128xf32> to vector<32xf32>
    %11 = vector.shape_cast %10 : vector<32xf32> to vector<32x1xf32>
    %cst_7 = arith.constant 1.280000e+02 : f32
    %12 = vector.broadcast %cst_7 : f32 to vector<32x1xf32>
    %13 = arith.divf %11, %12 : vector<32x1xf32>
    %14 = vector.broadcast %6 : vector<32x1xf32> to vector<32x128xf32>
    %15 = arith.subf %0, %14 : vector<32x128xf32>
    %cst_8 = arith.constant 9.99999974E-6 : f32
    %16 = vector.broadcast %cst_8 : f32 to vector<32x1xf32>
    %17 = arith.addf %13, %16 : vector<32x1xf32>
    %18 = math.rsqrt %17 : vector<32x1xf32>
    %19 = vector.broadcast %18 : vector<32x1xf32> to vector<32x128xf32>
    %20 = arith.mulf %15, %19 : vector<32x128xf32>
    %21 = vector.broadcast %1 : vector<1x128xf32> to vector<32x128xf32>
    %22 = arith.mulf %20, %21 : vector<32x128xf32>
    %23 = vector.broadcast %2 : vector<1x128xf32> to vector<32x128xf32>
    %24 = arith.addf %22, %23 : vector<32x128xf32>
    %c0_9 = arith.constant 0 : index
    %c0_10 = arith.constant 0 : index
    %25 = vector.load %arg4[%c0_9, %c0_10] : memref<32x128xf32, #tpu.memory_space<vmem>>, vector<32x128xf32>
    tpu.vector_store %arg4[%c0_9, %c0_10], %24 {strides = array<i32>} : memref<32x128xf32, #tpu.memory_space<vmem>>, vector<32x128xf32>,
    return
  }
  func.func @transform_0(%arg0: i32) -> (i32, i32) {
    %c0_i32 = arith.constant 0 : i32
    %c0_i32_0 = arith.constant 0 : i32
    return %arg0, %c0_i32 : i32, i32
  }
  func.func @transform_1(%arg0: i32) -> (i32, i32) {
    %c0_i32 = arith.constant 0 : i32
    %c0_i32_0 = arith.constant 0 : i32
    %c0_i32_1 = arith.constant 0 : i32
    return %c0_i32, %c0_i32_0 : i32, i32
  }
  func.func @transform_2(%arg0: i32) -> (i32, i32) {
    %c0_i32 = arith.constant 0 : i32
    %c0_i32_0 = arith.constant 0 : i32
    %c0_i32_1 = arith.constant 0 : i32
    return %c0_i32, %c0_i32_0 : i32, i32
  }
  func.func @transform_3(%arg0: i32) -> (i32, i32) {
    %c0_i32 = arith.constant 0 : i32
    %c0_i32_0 = arith.constant 0 : i32
    return %arg0, %c0_i32 : i32, i32
  }
}

</mosaic_0001>

<llo_original>
// kernel: forward.5
$region0: #{forward.5}
  #allocation0 [shape = 'u32[]', space=smem, size = 0x4, offset = 0x4, fixed_abs, tag = 'smem constant byte address 0x4 - core index']
  #allocation1 [shape = 'u32[72,128]{1,0:T(1,128)}', space=vmem, size = 0x9000, scoped, tag = 'internal scratch']
  %s0 = inlined_call_operand.hbm [shape: f32[32,128], index: 0, kind: input, shape index: {}]
  %s1 = inlined_call_operand.vmem [shape: f32[1,128], index: 1, kind: input, shape index: {}]
  %s2 = inlined_call_operand.vmem [shape: f32[1,128], index: 2, kind: input, shape index: {}]
  %s3 = inlined_call_operand.vmem [shape: f32[32,128], index: 3, kind: output, shape index: {}]
  %s4 = sld [smem:[#allocation0]]
  $region26: #{forward.5} parent=0
    _
  %s6 = ssub.s32 1, %s4
  %s7 = scalar_select 0, %s6, %s4
  $region1: #{forward.5} parent=0
    #allocation2 [shape = 'u8[16384]{0}', space=vmem, size = 0x4000, scoped, tag = 'input window, operand 0, single buffered']
    #allocation3 [shape = 's32[1]{0}', space=sflag, size = 0x4, scoped, tag = 'scoped memory for forward.5']
    %8 = vsyncpa [#allocation3], 0
    // Predicated region
    $region2: #{forward.5} parent=1 // pred_check
      _
    $region3: #{forward.5} parent=1 // pred_check_branch
      %10 = sbr.rel (0) target = $region5
    $region4: #{forward.5} parent=1 // pred_region
      %12 = vsyncadd [#allocation3], 0
      %s13 = sshll.u32 %s0, 4
      %s14 = int_to_ptr.hbm [resolvable:$true] %s13
      %s15 = sshll.u32 [#allocation2], 4
      %s16 = int_to_ptr.vmem [resolvable:$true] %s15
      %21 = dma.hbm_to_vmem [thread:$0]  %s14, 512, %s16, [#allocation3], 128, 128, 8
    $region5: #{forward.5} parent=1 // pred_fallthru
      _
    // Predicated region
    $region6: #{forward.5} parent=1 // pred_check
      _
    $region7: #{forward.5} parent=1 // pred_check_branch
      %23 = sbr.rel (0) target = $region9
    $region8: #{forward.5} parent=1 // pred_region
      _
    $region9: #{forward.5} parent=1 // pred_fallthru
      _
    // Predicated region
    $region10: #{forward.5} parent=1 // pred_check
      _
    $region11: #{forward.5} parent=1 // pred_check_branch
      %25 = sbr.rel (0) target = $region13
    $region12: #{forward.5} parent=1 // pred_region
      _
    $region13: #{forward.5} parent=1 // pred_fallthru
      _
    // Predicated region
    $region14: #{forward.5} parent=1 // pred_check
      _
    $region15: #{forward.5} parent=1 // pred_check_branch
      %27 = sbr.rel (0) target = $region17
    $region16: #{forward.5} parent=1 // pred_region
      %29 = dma.done [#allocation3], 512
    $region17: #{forward.5} parent=1 // pred_fallthru
      _
    %v30 = vld [vmem:[#allocation2] sm:$0xff]
    %v31 = vld [vmem:[#allocation2 + $0x8] sm:$0xff]
    %v32 = vld [vmem:[#allocation2 + $0x10] sm:$0xff]
    %v33 = vld [vmem:[#allocation2 + $0x18] sm:$0xff]
    %v34 = vld [vmem:[%s1] sm:$0x1]
    %v35 = vld [vmem:[%s2] sm:$0x1]
    %36 = vadd.xlane.f32.xlu0 %v30
    %v37 = vpop.xlane.xlu0 %36
    %38 = vadd.xlane.f32.xlu0 %v31
    %v39 = vpop.xlane.xlu0 %38
    %40 = vadd.xlane.f32.xlu0 %v32
    %v41 = vpop.xlane.xlu0 %40
    %42 = vadd.xlane.f32.xlu0 %v33
    %v43 = vpop.xlane.xlu0 %42
    %v44 = vrcp.pop 128.0
    %v45 = vmul.f32 128.0, %v44
    %v46 = vsub.f32 1.0, %v45
    %v47 = vmul.f32 %v44, %v46
    %v48 = vadd.f32 %v44, %v47
    %vm49 = vweird.f32 %v44
    %v50 = vsel %vm49, %v44, %v48
    %v51 = vmul.f32 %v37, %v50
    %v52 = vmul.f32 %v39, %v50
    %v53 = vmul.f32 %v41, %v50
    %v54 = vmul.f32 %v43, %v50
    %v55 = vsub.f32 %v30, %v51
    %v56 = vsub.f32 %v31, %v52
    %v57 = vsub.f32 %v32, %v53
    %v58 = vsub.f32 %v33, %v54
    %v59 = vmul.f32 %v55, %v55
    %v60 = vmul.f32 %v56, %v56
    %v61 = vmul.f32 %v57, %v57
    %v62 = vmul.f32 %v58, %v58
    %63 = vadd.xlane.f32.xlu0 %v59
    %v64 = vpop.xlane.xlu0 %63
    %65 = vadd.xlane.f32.xlu0 %v60
    %v66 = vpop.xlane.xlu0 %65
    %67 = vadd.xlane.f32.xlu0 %v61
    %v68 = vpop.xlane.xlu0 %67
    %69 = vadd.xlane.f32.xlu0 %v62
    %v70 = vpop.xlane.xlu0 %69
    %v71 = vmul.f32 %v64, %v50
    %v72 = vmul.f32 %v66, %v50
    %v73 = vmul.f32 %v68, %v50
    %v74 = vmul.f32 %v70, %v50
    %v75 = vadd.f32 %v71, 1e-05
    %v76 = vadd.f32 %v72, 1e-05
    %v77 = vadd.f32 %v73, 1e-05
    %v78 = vadd.f32 %v74, 1e-05
    %v79 = vrsqrt.pop %v75
    %v80 = vmul.f32 %v79, %v75
    %v81 = vmul.f32 %v80, %v79
    %v82 = vmul.f32 0.5, %v81
    %v83 = vsub.f32 1.5, %v82
    %v84 = vmul.f32 %v79, %v83
    %vm85 = vweird.f32 %v75
    %vm86 = vweird.f32 %v79
    %vm87 = vmor %vm85, %vm86
    %v88 = vsel %vm87, %v79, %v84
    %v89 = vrsqrt.pop %v76
    %v90 = vmul.f32 %v89, %v76
    %v91 = vmul.f32 %v90, %v89
    %v92 = vmul.f32 0.5, %v91
    %v93 = vsub.f32 1.5, %v92
    %v94 = vmul.f32 %v89, %v93
    %vm95 = vweird.f32 %v76
    %vm96 = vweird.f32 %v89
    %vm97 = vmor %vm95, %vm96
    %v98 = vsel %vm97, %v89, %v94
    %v99 = vrsqrt.pop %v77
    %v100 = vmul.f32 %v99, %v77
    %v101 = vmul.f32 %v100, %v99
    %v102 = vmul.f32 0.5, %v101
    %v103 = vsub.f32 1.5, %v102
    %v104 = vmul.f32 %v99, %v103
    %vm105 = vweird.f32 %v77
    %vm106 = vweird.f32 %v99
    %vm107 = vmor %vm105, %vm106
    %v108 = vsel %vm107, %v99, %v104
    %v109 = vrsqrt.pop %v78
    %v110 = vmul.f32 %v109, %v78
    %v111 = vmul.f32 %v110, %v109
    %v112 = vmul.f32 0.5, %v111
    %v113 = vsub.f32 1.5, %v112
    %v114 = vmul.f32 %v109, %v113
    %vm115 = vweird.f32 %v78
    %vm116 = vweird.f32 %v109
    %vm117 = vmor %vm115, %vm116
    %v118 = vsel %vm117, %v109, %v114
    %v119 = vmul.f32 %v55, %v88
    %v120 = vmul.f32 %v56, %v98
    %v121 = vmul.f32 %v57, %v108
    %v122 = vmul.f32 %v58, %v118
    %v124 = vperm.slane %v34, 0
    %v126 = vmul.f32 %v119, %v124
    %v127 = vmul.f32 %v120, %v124
    %v128 = vmul.f32 %v121, %v124
    %v129 = vmul.f32 %v122, %v124
    %v131 = vperm.slane %v35, 0
    %v133 = vadd.f32 %v126, %v131
    %v134 = vadd.f32 %v127, %v131
    %v135 = vadd.f32 %v128, %v131
    %v136 = vadd.f32 %v129, %v131
    %137 = vst [vmem:[%s3] sm:$0xff] %v133
    %138 = vst [vmem:[%s3 + $0x8] sm:$0xff] %v134
    %139 = vst [vmem:[%s3 + $0x10] sm:$0xff] %v135
    %140 = vst [vmem:[%s3 + $0x18] sm:$0xff] %v136
    // Predicated region
    $region18: #{forward.5} parent=1 // pred_check
      _
    $region19: #{forward.5} parent=1 // pred_check_branch
      %142 = sbr.rel (0) target = $region21
    $region20: #{forward.5} parent=1 // pred_region
      _
    $region21: #{forward.5} parent=1 // pred_fallthru
      _
    // Predicated region
    $region22: #{forward.5} parent=1 // pred_check
      _
    $region23: #{forward.5} parent=1 // pred_check_branch
      %144 = sbr.rel (0) target = $region25
    $region24: #{forward.5} parent=1 // pred_region
      _
    $region25: #{forward.5} parent=1 // pred_fallthru
      _
    %145 = vsyncpa [#allocation3], 1

// kernel: forward.4
$region0: #{forward.4}
  #allocation0 [shape = 'u32[]', space=smem, size = 0x4, offset = 0x4, fixed_abs, tag = 'smem constant byte address 0x4 - core index']
  #allocation1 [shape = 'u32[72,128]{1,0:T(1,128)}', space=vmem, size = 0x9000, scoped, tag = 'internal scratch']
  %s0 = inlined_call_operand.hbm [shape: f32[2,16,128], index: 0, kind: input, shape index: {}]
  %s1 = inlined_call_operand.vmem [shape: f32[1,128], index: 1, kind: input, shape index: {}]
  %s2 = inlined_call_operand.vmem [shape: f32[1,128], index: 2, kind: input, shape index: {}]
  %s3 = inlined_call_operand.hbm [shape: bf16[128,384], index: 3, kind: input, shape index: {}]
  %s4 = inlined_call_operand.vmem [shape: bf16[128,128], index: 4, kind: input, shape index: {}]
  %s5 = inlined_call_operand.vmem [shape: f32[1,128], index: 5, kind: input, shape index: {}]
  %s6 = inlined_call_operand.hbm [shape: f32[2,16,128], index: 6, kind: output, shape index: {}]
  %s7 = sld [smem:[#allocation0]]
  $region65: #{forward.4} parent=0
    _
  %s9 = ssub.s32 1, %s7
  %s10 = scalar_select 0, %s9, %s7
  $region1: #{forward.4} parent=0
    #allocation2 [shape = 'u8[16384]{0}', space=vmem, size = 0x4000, scoped, tag = 'input window, operand 0']
    #allocation3 [shape = 's32[2]{0}', space=sflag, size = 0x8, scoped, tag = 'scoped memory for forward.4']
    #allocation4 [shape = 's32[2]{0}', space=sflag, size = 0x8, scoped, tag = 'scoped memory for forward.4']
    #allocation5 [shape = 'u8[98304]{0}', space=vmem, size = 0x18000, scoped, tag = 'input window, operand 3, single buffered']
    #allocation6 [shape = 's32[1]{0}', space=sflag, size = 0x4, scoped, tag = 'scoped memory for forward.4']
    #allocation7 [shape = 'u8[16384]{0}', space=vmem, size = 0x4000, scoped, tag = 'output window, operand 0']
    %11 = vsyncpa [#allocation3], 0
    %s12 = scalar_lea.sflag [#allocation3], 1
    %13 = vsyncpa %s12, 0
    %14 = vsyncpa [#allocation6], 0
    %15 = vsyncpa [#allocation4], 0
    %s16 = scalar_lea.sflag [#allocation4], 1
    %17 = vsyncpa %s16, 0
    loop: start=0, step=1, limit=4
    $region2: #{forward.4} parent=1 // loop_pre_header
      _
    $region3: #{forward.4} parent=1 // loop_header
      %s19 = sphi 0, %s23
      %p20 = scmp.ge.s32.totalorder %s19, 4
      %s29 = sphi 0, %s31
      %s32 = sphi 0, %s29
      %s33 = sphi 0, %s32
      %s49 = sphi 0, %s33
      %s53 = sphi 0, %s53
      %s55 = sphi 0, %s53
      %s56 = sphi 0, %s55
      %s70 = sphi 0, %s56
      %s74 = sphi 0, %s74
      %s76 = sphi 0, %s74
      %s77 = sphi 0, %s76
      %s91 = sphi 0, %s77
      %s95 = sphi 0, %s95
      %s97 = sphi 0, %s95
      %s98 = sphi 0, %s97
      %s112 = sphi 0, %s98
      %s116 = sphi 0, %s116
      %s118 = sphi 0, %s116
      %s119 = sphi 0, %s118
      %s133 = sphi 0, %s119
      %s137 = sphi 0, %s137
      %s139 = sphi 0, %s137
      %s140 = sphi 0, %s139
      %s154 = sphi 0, %s140
      %s160 = sphi 0, %s162
      %s163 = sphi 0, %s160
      %s164 = sphi 0, %s163
      %s180 = sphi 0, %s164
    $region4: #{forward.4} parent=1 // loop_header_branch
      %22 = sbr.rel (%p20) target = $region8
    $region5: #{forward.4} parent=1 // loop_body
      %s24 = ssub.s32 %s19, 1
      %s25 = ssub.s32 %s19, 2
      %s26 = sadd.s32 %s19, 1
      %s27 = ssub.s32 %s19, %s26
      %p28 = scmp.eq.s32.totalorder %s27, 0
      %s30 = sadd.s32 %s29, 1
      %s31 = scalar_select %p28, %s29, %s30
      %p34 = pneg %p28
      %p35 = scmp.eq.s32.totalorder %s19, 1
      %p36 = por %p34, %p35
      %p37 = scmp.ne.s32.totalorder %s29, %s32
      %p38 = scmp.eq.s32.totalorder %s19, 0
      %p39 = por %p37, %p38
      %p40 = scmp.ne.s32.totalorder %s29, %s32
      %p41 = scmp.eq.s32.totalorder %s24, 1
      %p42 = por %p40, %p41
      %p43 = scmp.ne.s32.totalorder %s32, %s33
      %p44 = scmp.eq.s32.totalorder %s24, 0
      %p45 = por %p43, %p44
      %p46 = scmp.ne.s32.totalorder %s32, %s33
      %p47 = scmp.eq.s32.totalorder %s25, 1
      %p48 = por %p46, %p47
      %p50 = scmp.ne.s32.totalorder %s33, %s49
      %p51 = scmp.eq.s32.totalorder %s25, 0
      %p52 = por %p50, %p51
      %s54 = sadd.s32 %s53, 1
      %p57 = scmp.eq.s32.totalorder %s19, 1
      %p58 = scmp.ne.s32.totalorder %s53, %s55
      %p59 = scmp.eq.s32.totalorder %s19, 0
      %p60 = por %p58, %p59
      %p61 = scmp.ne.s32.totalorder %s53, %s55
      %p62 = scmp.eq.s32.totalorder %s24, 1
      %p63 = por %p61, %p62
      %p64 = scmp.ne.s32.totalorder %s55, %s56
      %p65 = scmp.eq.s32.totalorder %s24, 0
      %p66 = por %p64, %p65
      %p67 = scmp.ne.s32.totalorder %s55, %s56
      %p68 = scmp.eq.s32.totalorder %s25, 1
      %p69 = por %p67, %p68
      %p71 = scmp.ne.s32.totalorder %s56, %s70
      %p72 = scmp.eq.s32.totalorder %s25, 0
      %p73 = por %p71, %p72
      %s75 = sadd.s32 %s74, 1
      %p78 = scmp.eq.s32.totalorder %s19, 1
      %p79 = scmp.ne.s32.totalorder %s74, %s76
      %p80 = scmp.eq.s32.totalorder %s19, 0
      %p81 = por %p79, %p80
      %p82 = scmp.ne.s32.totalorder %s74, %s76
      %p83 = scmp.eq.s32.totalorder %s24, 1
      %p84 = por %p82, %p83
      %p85 = scmp.ne.s32.totalorder %s76, %s77
      %p86 = scmp.eq.s32.totalorder %s24, 0
      %p87 = por %p85, %p86
      %p88 = scmp.ne.s32.totalorder %s76, %s77
      %p89 = scmp.eq.s32.totalorder %s25, 1
      %p90 = por %p88, %p89
      %p92 = scmp.ne.s32.totalorder %s77, %s91
      %p93 = scmp.eq.s32.totalorder %s25, 0
      %p94 = por %p92, %p93
      %s96 = sadd.s32 %s95, 1
      %p99 = scmp.eq.s32.totalorder %s19, 1
      %p100 = scmp.ne.s32.totalorder %s95, %s97
      %p101 = scmp.eq.s32.totalorder %s19, 0
      %p102 = por %p100, %p101
      %p103 = scmp.ne.s32.totalorder %s95, %s97
      %p104 = scmp.eq.s32.totalorder %s24, 1
      %p105 = por %p103, %p104
      %p106 = scmp.ne.s32.totalorder %s97, %s98
      %p107 = scmp.eq.s32.totalorder %s24, 0
      %p108 = por %p106, %p107
      %p109 = scmp.ne.s32.totalorder %s97, %s98
      %p110 = scmp.eq.s32.totalorder %s25, 1
      %p111 = por %p109, %p110
      %p113 = scmp.ne.s32.totalorder %s98, %s112
      %p114 = scmp.eq.s32.totalorder %s25, 0
      %p115 = por %p113, %p114
      %s117 = sadd.s32 %s116, 1
      %p120 = scmp.eq.s32.totalorder %s19, 1
      %p121 = scmp.ne.s32.totalorder %s116, %s118
      %p122 = scmp.eq.s32.totalorder %s19, 0
      %p123 = por %p121, %p122
      %p124 = scmp.ne.s32.totalorder %s116, %s118
      %p125 = scmp.eq.s32.totalorder %s24, 1
      %p126 = por %p124, %p125
      %p127 = scmp.ne.s32.totalorder %s118, %s119
      %p128 = scmp.eq.s32.totalorder %s24, 0
      %p129 = por %p127, %p128
      %p130 = scmp.ne.s32.totalorder %s118, %s119
      %p131 = scmp.eq.s32.totalorder %s25, 1
      %p132 = por %p130, %p131
      %p134 = scmp.ne.s32.totalorder %s119, %s133
      %p135 = scmp.eq.s32.totalorder %s25, 0
      %p136 = por %p134, %p135
      %s138 = sadd.s32 %s137, 1
      %p141 = scmp.eq.s32.totalorder %s19, 1
      %p142 = scmp.ne.s32.totalorder %s137, %s139
      %p143 = scmp.eq.s32.totalorder %s19, 0
      %p144 = por %p142, %p143
      %p145 = scmp.ne.s32.totalorder %s137, %s139
      %p146 = scmp.eq.s32.totalorder %s24, 1
      %p147 = por %p145, %p146
      %p148 = scmp.ne.s32.totalorder %s139, %s140
      %p149 = scmp.eq.s32.totalorder %s24, 0
      %p150 = por %p148, %p149
      %p151 = scmp.ne.s32.totalorder %s139, %s140
      %p152 = scmp.eq.s32.totalorder %s25, 1
      %p153 = por %p151, %p152
      %p155 = scmp.ne.s32.totalorder %s140, %s154
      %p156 = scmp.eq.s32.totalorder %s25, 0
      %p157 = por %p155, %p156
      %s158 = ssub.s32 %s19, %s26
      %p159 = scmp.eq.s32.totalorder %s158, 0
      %s161 = sadd.s32 %s160, 1
      %s162 = scalar_select %p159, %s160, %s161
      %p165 = pneg %p159
      %p166 = scmp.eq.s32.totalorder %s19, 1
      %p167 = por %p165, %p166
      %p168 = scmp.ne.s32.totalorder %s160, %s163
      %p169 = scmp.eq.s32.totalorder %s19, 0
      %p170 = por %p168, %p169
      %p171 = scmp.ne.s32.totalorder %s160, %s163
      %p172 = scmp.eq.s32.totalorder %s24, 1
      %p173 = por %p171, %p172
      %p174 = scmp.ne.s32.totalorder %s163, %s164
      %p175 = scmp.eq.s32.totalorder %s24, 0
      %p176 = por %p174, %p175
      %p177 = scmp.ne.s32.totalorder %s163, %s164
      %p178 = scmp.eq.s32.totalorder %s25, 1
      %p179 = por %p177, %p178
      %p181 = scmp.ne.s32.totalorder %s164, %s180
      %p182 = scmp.eq.s32.totalorder %s25, 0
      %p183 = por %p181, %p182
      %p184 = scmp.le.s32.totalorder 1, %s19
      %p185 = scmp.lt.s32.totalorder %s19, 3
      %p186 = pnand %p184, %p185
      %p187 = pneg %p186
      // Predicated region
      $region9: #{forward.4} parent=5 // pred_check
        _
      $region10: #{forward.4} parent=5 // pred_check_branch
        %189 = sbr.rel (%p186) target = $region12
      $region11: #{forward.4} parent=5 // pred_region
        %s190 = ssub.s32 %s19, 1
        // Predicated region
        $region13: #{forward.4} parent=11 // pred_check
          %p191 = pneg %p66
        $region14: #{forward.4} parent=11 // pred_check_branch
          %193 = sbr.rel (%p191) target = $region16
        $region15: #{forward.4} parent=11 // pred_region
          _
        $region16: #{forward.4} parent=11 // pred_fallthru
          _
        // Predicated region
        $region17: #{forward.4} parent=11 // pred_check
          %p194 = pneg %p87
        $region18: #{forward.4} parent=11 // pred_check_branch
          %196 = sbr.rel (%p194) target = $region20
        $region19: #{forward.4} parent=11 // pred_region
          _
        $region20: #{forward.4} parent=11 // pred_fallthru
          _
        // Predicated region
        $region21: #{forward.4} parent=11 // pred_check
          %p197 = pneg %p108
        $region22: #{forward.4} parent=11 // pred_check_branch
          %199 = sbr.rel (%p197) target = $region24
        $region23: #{forward.4} parent=11 // pred_region
          %201 = vsyncadd [#allocation6], 0
          %s202 = sshll.u32 %s3, 4
          %s203 = int_to_ptr.hbm [resolvable:$true] %s202
          %s204 = sshll.u32 [#allocation5], 4
          %s205 = int_to_ptr.vmem [resolvable:$true] %s204
          %210 = dma.hbm_to_vmem [thread:$0]  %s203, 3072, %s205, [#allocation6], 192, 192, 12
        $region24: #{forward.4} parent=11 // pred_fallthru
          _
        // Predicated region
        $region25: #{forward.4} parent=11 // pred_check
          %p211 = pneg %p129
        $region26: #{forward.4} parent=11 // pred_check_branch
          %213 = sbr.rel (%p211) target = $region28
        $region27: #{forward.4} parent=11 // pred_region
          _
        $region28: #{forward.4} parent=11 // pred_fallthru
          _
        // Predicated region
        $region29: #{forward.4} parent=11 // pred_check
          %p214 = pneg %p150
        $region30: #{forward.4} parent=11 // pred_check_branch
          %216 = sbr.rel (%p214) target = $region32
        $region31: #{forward.4} parent=11 // pred_region
          _
        $region32: #{forward.4} parent=11 // pred_fallthru
          _
      $region12: #{forward.4} parent=5 // pred_fallthru
        _
      %p217 = scmp.lt.s32.totalorder %s19, 2
      // Predicated region
      $region33: #{forward.4} parent=5 // pred_check
        %p218 = pneg %p217
      $region34: #{forward.4} parent=5 // pred_check_branch
        %220 = sbr.rel (%p218) target = $region36
      $region35: #{forward.4} parent=5 // pred_region
        // Predicated region
        $region37: #{forward.4} parent=35 // pred_check
          %p221 = pneg %p39
        $region38: #{forward.4} parent=35 // pred_check_branch
          %223 = sbr.rel (%p221) target = $region40
        $region39: #{forward.4} parent=35 // pred_region
          %s224 = sand.u32 %s29, 1
          %s225 = scalar_lea.sflag [#allocation3], %s224
          %s226 = sand.u32 %s29, 1
          %s227 = smul.addr %s226, 16
          %s228 = scalar_lea.vmem [#allocation2], %s227
          %230 = vsyncadd %s225, 0
          %s231 = smul.addr %s19, 2
          %s232 = smul.addr %s231, 8
          %s233 = scalar_lea.hbm %s0, %s232
          %s234 = sshll.u32 %s233, 4
          %s235 = int_to_ptr.hbm [resolvable:$true] %s234
          %s236 = sshll.u32 %s228, 4
          %s237 = int_to_ptr.vmem [resolvable:$true] %s236
          %242 = dma.hbm_to_vmem [thread:$0]  %s235, 256, %s237, %s225, 128, 128, 8
        $region40: #{forward.4} parent=35 // pred_fallthru
          _
      $region36: #{forward.4} parent=5 // pred_fallthru
        _
      %p243 = scmp.le.s32.totalorder 1, %s19
      %p244 = scmp.lt.s32.totalorder %s19, 3
      %p245 = pnand %p243, %p244
      %p246 = pneg %p245
      // Predicated region
      $region41: #{forward.4} parent=5 // pred_check
        _
      $region42: #{forward.4} parent=5 // pred_check_branch
        %248 = sbr.rel (%p245) target = $region44
      $region43: #{forward.4} parent=5 // pred_region
        %s249 = ssub.s32 %s19, 1
        %s250 = sand.u32 %s32, 1
        %s251 = scalar_lea.sflag [#allocation3], %s250
        %s252 = sand.u32 %s32, 1
        %s253 = smul.addr %s252, 16
        %s254 = scalar_lea.vmem [#allocation2], %s253
        // Predicated region
        $region45: #{forward.4} parent=43 // pred_check
          %p255 = pneg %p45
        $region46: #{forward.4} parent=43 // pred_check_branch
          %257 = sbr.rel (%p255) target = $region48
        $region47: #{forward.4} parent=43 // pred_region
          %259 = dma.done %s251, 256
        $region48: #{forward.4} parent=43 // pred_fallthru
          _
        // Predicated region
        $region49: #{forward.4} parent=43 // pred_check
          %p260 = pneg %p108
        $region50: #{forward.4} parent=43 // pred_check_branch
          %262 = sbr.rel (%p260) target = $region52
        $region51: #{forward.4} parent=43 // pred_region
          %264 = dma.done [#allocation6], 3072
        $region52: #{forward.4} parent=43 // pred_fallthru
          _
        %s265 = sand.u32 %s32, 1
        %s266 = scalar_lea.sflag [#allocation3], %s265
        %s267 = sand.u32 %s32, 1
        %s268 = smul.addr %s267, 16
        %s269 = scalar_lea.vmem [#allocation2], %s268
        %p270 = pneg %p45
        %p271 = pneg %p42
        %p272 = pneg %p66
        %p273 = pneg %p63
        %p274 = pneg %p87
        %p275 = pneg %p84
        %p276 = pneg %p108
        %p277 = pneg %p105
        %p278 = pneg %p129
        %p279 = pneg %p126
        %p280 = pneg %p150
        %p281 = pneg %p147
        %p282 = pneg %p176
        %p283 = pneg %p173
        %s284 = sand.u32 %s163, 1
        %s285 = scalar_lea.sflag [#allocation4], %s284
        %s286 = sand.u32 %s163, 1
        %s287 = smul.addr %s286, 16
        %s288 = scalar_lea.vmem [#allocation7], %s287
        %v290 = vld [vmem:[%s254] sm:$0xff]
        %v291 = vld [vmem:[%s254 + $0x8] sm:$0xff]
        %v292 = vld [vmem:[%s1] sm:$0x1]
        %v293 = vld [vmem:[%s2] sm:$0x1]
        %294 = vadd.xlane.f32.xlu0 %v290
        %v295 = vpop.xlane.xlu0 %294
        %296 = vadd.xlane.f32.xlu0 %v291
        %v297 = vpop.xlane.xlu0 %296
        %v298 = vrcp.pop 128.0
        %v299 = vmul.f32 128.0, %v298
        %v300 = vsub.f32 1.0, %v299
        %v301 = vmul.f32 %v298, %v300
        %v302 = vadd.f32 %v298, %v301
        %vm303 = vweird.f32 %v298
        %v304 = vsel %vm303, %v298, %v302
        %v305 = vmul.f32 %v295, %v304
        %v306 = vmul.f32 %v297, %v304
        %v307 = vsub.f32 %v290, %v305
        %v308 = vsub.f32 %v291, %v306
        %v309 = vmul.f32 %v307, %v307
        %v310 = vmul.f32 %v308, %v308
        %311 = vadd.xlane.f32.xlu0 %v309
        %v312 = vpop.xlane.xlu0 %311
        %313 = vadd.xlane.f32.xlu0 %v310
        %v314 = vpop.xlane.xlu0 %313
        %v315 = vmul.f32 %v312, %v304
        %v316 = vmul.f32 %v314, %v304
        %v317 = vadd.f32 %v315, 1e-05
        %v318 = vadd.f32 %v316, 1e-05
        %v319 = vrsqrt.pop %v317
        %v320 = vmul.f32 %v319, %v317
        %v321 = vmul.f32 %v320, %v319
        %v322 = vmul.f32 0.5, %v321
        %v323 = vsub.f32 1.5, %v322
        %v324 = vmul.f32 %v319, %v323
        %vm325 = vweird.f32 %v317
        %vm326 = vweird.f32 %v319
        %vm327 = vmor %vm325, %vm326
        %v328 = vsel %vm327, %v319, %v324
        %v329 = vrsqrt.pop %v318
        %v330 = vmul.f32 %v329, %v318
        %v331 = vmul.f32 %v330, %v329
        %v332 = vmul.f32 0.5, %v331
        %v333 = vsub.f32 1.5, %v332
        %v334 = vmul.f32 %v329, %v333
        %vm335 = vweird.f32 %v318
        %vm336 = vweird.f32 %v329
        %vm337 = vmor %vm335, %vm336
        %v338 = vsel %vm337, %v329, %v334
        %v339 = vmul.f32 %v307, %v328
        %v340 = vmul.f32 %v308, %v338
        %v342 = vperm.slane %v292, 0
        %v344 = vmul.f32 %v339, %v342
        %v345 = vmul.f32 %v340, %v342
        %v347 = vperm.slane %v293, 0
        %v349 = vadd.f32 %v344, %v347
        %v350 = vadd.f32 %v345, %v347
        %v351 = vpack.c.bf16 %v350, %v349
        %v352 = vld [vmem:[#allocation5] sm:$0xff]
        %v353 = vld [vmem:[#allocation5 + $0x8] sm:$0xf]
        %v354 = vld [vmem:[#allocation5 + $0xc] sm:$0xff]
        %v355 = vld [vmem:[#allocation5 + $0x14] sm:$0xf]
        %v356 = vld [vmem:[#allocation5 + $0x18] sm:$0xff]
        %v357 = vld [vmem:[#allocation5 + $0x20] sm:$0xf]
        %v358 = vld [vmem:[#allocation5 + $0x24] sm:$0xff]
        %v359 = vld [vmem:[#allocation5 + $0x2c] sm:$0xf]
        %v360 = vld [vmem:[#allocation5 + $0x30] sm:$0xff]
        %v361 = vld [vmem:[#allocation5 + $0x38] sm:$0xf]
        %v362 = vld [vmem:[#allocation5 + $0x3c] sm:$0xff]
        %v363 = vld [vmem:[#allocation5 + $0x44] sm:$0xf]
        %v364 = vld [vmem:[#allocation5 + $0x48] sm:$0xff]
        %v365 = vld [vmem:[#allocation5 + $0x50] sm:$0xf]
        %v366 = vld [vmem:[#allocation5 + $0x54] sm:$0xff]
        %v367 = vld [vmem:[#allocation5 + $0x5c] sm:$0xf]
        %v368 = vld [vmem:[#allocation5 + $0x60] sm:$0xff]
        %v369 = vld [vmem:[#allocation5 + $0x68] sm:$0xf]
        %v370 = vld [vmem:[#allocation5 + $0x6c] sm:$0xff]
        %v371 = vld [vmem:[#allocation5 + $0x74] sm:$0xf]
        %v372 = vld [vmem:[#allocation5 + $0x78] sm:$0xff]
        %v373 = vld [vmem:[#allocation5 + $0x80] sm:$0xf]
        %v374 = vld [vmem:[#allocation5 + $0x84] sm:$0xff]
        %v375 = vld [vmem:[#allocation5 + $0x8c] sm:$0xf]
        %v376 = vld [vmem:[#allocation5 + $0x90] sm:$0xff]
        %v377 = vld [vmem:[#allocation5 + $0x98] sm:$0xf]
        %v378 = vld [vmem:[#allocation5 + $0x9c] sm:$0xff]
        %v379 = vld [vmem:[#allocation5 + $0xa4] sm:$0xf]
        %v380 = vld [vmem:[#allocation5 + $0xa8] sm:$0xff]
        %v381 = vld [vmem:[#allocation5 + $0xb0] sm:$0xf]
        %v382 = vld [vmem:[#allocation5 + $0xb4] sm:$0xff]
        %v383 = vld [vmem:[#allocation5 + $0xbc] sm:$0xf]
        %v416 = vunpack.c.l.b16 %v352
        %v417 = vunpack.c.h.b16 %v352
        %v418 = vunpack.c.l.b16 %v353
        %v419 = vunpack.c.l.b16 %v354
        %v420 = vunpack.c.h.b16 %v354
        %v421 = vunpack.c.l.b16 %v355
        %v422 = vunpack.c.l.b16 %v356
        %v423 = vunpack.c.h.b16 %v356
        %v424 = vunpack.c.l.b16 %v357
        %v425 = vunpack.c.l.b16 %v358
        %v426 = vunpack.c.h.b16 %v358
        %v427 = vunpack.c.l.b16 %v359
        %v428 = vunpack.c.l.b16 %v360
        %v429 = vunpack.c.h.b16 %v360
        %v430 = vunpack.c.l.b16 %v361
        %v431 = vunpack.c.l.b16 %v362
        %v432 = vunpack.c.h.b16 %v362
        %v433 = vunpack.c.l.b16 %v363
        %v434 = vunpack.c.l.b16 %v364
        %v435 = vunpack.c.h.b16 %v364
        %v436 = vunpack.c.l.b16 %v365
        %v437 = vunpack.c.l.b16 %v366
        %v438 = vunpack.c.h.b16 %v366
        %v439 = vunpack.c.l.b16 %v367
        %v440 = vunpack.c.l.b16 %v368
        %v441 = vunpack.c.h.b16 %v368
        %v442 = vunpack.c.l.b16 %v369
        %v443 = vunpack.c.l.b16 %v370
        %v444 = vunpack.c.h.b16 %v370
        %v445 = vunpack.c.l.b16 %v371
        %v446 = vunpack.c.l.b16 %v372
        %v447 = vunpack.c.h.b16 %v372
        %v448 = vunpack.c.l.b16 %v373
        %v449 = vunpack.c.l.b16 %v374
        %v450 = vunpack.c.h.b16 %v374
        %v451 = vunpack.c.l.b16 %v375
        %v452 = vunpack.c.l.b16 %v376
        %v453 = vunpack.c.h.b16 %v376
        %v454 = vunpack.c.l.b16 %v377
        %v455 = vunpack.c.l.b16 %v378
        %v456 = vunpack.c.h.b16 %v378
        %v457 = vunpack.c.l.b16 %v379
        %v458 = vunpack.c.l.b16 %v380
        %v459 = vunpack.c.h.b16 %v380
        %v460 = vunpack.c.l.b16 %v381
        %v461 = vunpack.c.l.b16 %v382
        %v462 = vunpack.c.h.b16 %v382
        %v463 = vunpack.c.l.b16 %v383
        %v464 = vpack.c.b16 %v419, %v416
        %v465 = vpack.c.b16 %v420, %v417
        %v466 = vpack.c.b16 %v421, %v418
        %v467 = vpack.c.b16 %v425, %v422
        %v468 = vpack.c.b16 %v426, %v423
        %v469 = vpack.c.b16 %v427, %v424
        %v470 = vpack.c.b16 %v431, %v428
        %v471 = vpack.c.b16 %v432, %v429
        %v472 = vpack.c.b16 %v433, %v430
        %v473 = vpack.c.b16 %v437, %v434
        %v474 = vpack.c.b16 %v438, %v435
        %v475 = vpack.c.b16 %v439, %v436
        %v476 = vpack.c.b16 %v443, %v440
        %v477 = vpack.c.b16 %v444, %v441
        %v478 = vpack.c.b16 %v445, %v442
        %v479 = vpack.c.b16 %v449, %v446
        %v480 = vpack.c.b16 %v450, %v447
        %v481 = vpack.c.b16 %v451, %v448
        %v482 = vpack.c.b16 %v455, %v452
        %v483 = vpack.c.b16 %v456, %v453
        %v484 = vpack.c.b16 %v457, %v454
        %v485 = vpack.c.b16 %v461, %v458
        %v486 = vpack.c.b16 %v462, %v459
        %v487 = vpack.c.b16 %v463, %v460
        %512 = vmatpush.bf16.msra.mxu0 %v485
        %513 = vmatpush.bf16.msra.mxu0 %v482
        %514 = vmatpush.bf16.msra.mxu0 %v479
        %515 = vmatpush.bf16.msra.mxu0 %v476
        %516 = vmatpush.bf16.msra.mxu0 %v473
        %517 = vmatpush.bf16.msra.mxu0 %v470
        %518 = vmatpush.bf16.msra.mxu0 %v467
        %519 = vmatpush.bf16.msra.mxu0 %v464
        %520 = vmatmul.bf16.gmra.mxu0 %v351
        %v521 = vpop.f32.mrf.mxu0
        %v522 = vadd.f32 0.0, %v521
        %v523 = vpop.f32.mrf.mxu0
        %v524 = vadd.f32 0.0, %v523
        %525 = vdwg.mxu0
        %526 = vmatpush.bf16.msra.mxu0 %v486
        %527 = vmatpush.bf16.msra.mxu0 %v483
        %528 = vmatpush.bf16.msra.mxu0 %v480
        %529 = vmatpush.bf16.msra.mxu0 %v477
        %530 = vmatpush.bf16.msra.mxu0 %v474
        %531 = vmatpush.bf16.msra.mxu0 %v471
        %532 = vmatpush.bf16.msra.mxu0 %v468
        %533 = vmatpush.bf16.msra.mxu0 %v465
        %534 = vmatmul.bf16.gmra.mxu0 %v351
        %v535 = vpop.f32.mrf.mxu0
        %v536 = vadd.f32 0.0, %v535
        %v537 = vpop.f32.mrf.mxu0
        %v538 = vadd.f32 0.0, %v537
        %539 = vdwg.mxu0
        %540 = vmatpush.bf16.msra.mxu0 %v487
        %541 = vmatpush.bf16.msra.mxu0 %v484
        %542 = vmatpush.bf16.msra.mxu0 %v481
        %543 = vmatpush.bf16.msra.mxu0 %v478
        %544 = vmatpush.bf16.msra.mxu0 %v475
        %545 = vmatpush.bf16.msra.mxu0 %v472
        %546 = vmatpush.bf16.msra.mxu0 %v469
        %547 = vmatpush.bf16.msra.mxu0 %v466
        %548 = vmatmul.bf16.gmra.mxu0 %v351
        %v549 = vpop.f32.mrf.mxu0
        %v550 = vadd.f32 0.0, %v549
        %v551 = vpop.f32.mrf.mxu0
        %v552 = vadd.f32 0.0, %v551
        %553 = vdwg.mxu0
        %v554 = vpack.c.bf16 %v524, %v522
        %v555 = vpack.c.bf16 %v538, %v536
        %vm556 = vcmask 523264
        %v558 = vsel %vm556, %v554, 0
        %v561 = vsel %vm556, %v555, 0
        %563 = vmatpush.bf16.xpose.msra.mxu0 0
        %564 = vmatpush.bf16.xpose.msra.mxu0 0
        %565 = vmatpush.bf16.xpose.msra.mxu0 0
        %566 = vmatpush.bf16.xpose.msra.mxu0 0
        %567 = vmatpush.bf16.xpose.msra.mxu0 0
        %568 = vmatpush.bf16.xpose.msra.mxu0 0
        %569 = vmatpush.bf16.xpose.msra.mxu0 0
        %570 = vmatpush.bf16.xpose.msra.mxu0 %v561
        %571 = vmatmul.bf16.gmra.mxu0 %v558
        %v572 = vpop.f32.mrf.mxu0
        %v573 = vadd.f32 0.0, %v572
        %v574 = vpop.f32.mrf.mxu0
        %v575 = vadd.f32 0.0, %v574
        %576 = vdwg.mxu0
        %v577 = vmul.f32 %v573, 0.125
        %v578 = vmul.f32 %v575, 0.125
        %vm579 = vcmask 130048
        %v580 = vsel %vm579, %v577, -inf
        %581 = vmax.xlane.f32.xlu0 %v580
        %v582 = vpop.xlane.xlu0 %581
        %v583 = vsel %vm579, %v578, -inf
        %584 = vmax.xlane.f32.xlu0 %v583
        %v585 = vpop.xlane.xlu0 %584
        %v586 = vsub.f32 %v577, %v582
        %v587 = vsub.f32 %v578, %v585
        %v588 = vmul.f32 %v586, 1.442695
        %v589 = vpow.pop %v588
        %v590 = vmul.f32 %v587, 1.442695
        %v591 = vpow.pop %v590
        %v592 = vsel %vm579, %v589, 0.0
        %593 = vadd.xlane.f32.xlu0 %v592
        %v594 = vpop.xlane.xlu0 %593
        %v595 = vsel %vm579, %v591, 0.0
        %596 = vadd.xlane.f32.xlu0 %v595
        %v597 = vpop.xlane.xlu0 %596
        %v598 = vrcp.pop %v594
        %v599 = vrcp.pop %v597
        %v600 = vmul.f32 %v589, %v598
        %v601 = vmul.f32 %v591, %v599
        %v602 = vpack.c.bf16 %v601, %v600
        %v603 = vpack.c.bf16 %v552, %v550
        %v605 = vsel %vm579, %v602, 0
        %607 = vmatpush.bf16.msra.mxu0 0
        %608 = vmatpush.bf16.msra.mxu0 0
        %609 = vmatpush.bf16.msra.mxu0 0
        %610 = vmatpush.bf16.msra.mxu0 0
        %611 = vmatpush.bf16.msra.mxu0 0
        %612 = vmatpush.bf16.msra.mxu0 0
        %613 = vmatpush.bf16.msra.mxu0 0
        %614 = vmatpush.bf16.msra.mxu0 %v603
        %615 = vmatmul.bf16.gmra.mxu0 %v605
        %v616 = vpop.f32.mrf.mxu0
        %v617 = vadd.f32 0.0, %v616
        %v618 = vpop.f32.mrf.mxu0
        %v619 = vadd.f32 0.0, %v618
        %620 = vdwg.mxu0
        %622 = vrot.lane.b32.xlu0 %v554, 64
        %v623 = vpop.permute.xlu0 %622
        %625 = vrot.lane.b32.xlu0 %v555, 64
        %v626 = vpop.permute.xlu0 %625
        %v628 = vsel %vm556, %v623, 0
        %v631 = vsel %vm556, %v626, 0
        %633 = vmatpush.bf16.xpose.msra.mxu0 0
        %634 = vmatpush.bf16.xpose.msra.mxu0 0
        %635 = vmatpush.bf16.xpose.msra.mxu0 0
        %636 = vmatpush.bf16.xpose.msra.mxu0 0
        %637 = vmatpush.bf16.xpose.msra.mxu0 0
        %638 = vmatpush.bf16.xpose.msra.mxu0 0
        %639 = vmatpush.bf16.xpose.msra.mxu0 0
        %640 = vmatpush.bf16.xpose.msra.mxu0 %v631
        %641 = vmatmul.bf16.gmra.mxu0 %v628
        %v642 = vpop.f32.mrf.mxu0
        %v643 = vadd.f32 0.0, %v642
        %v644 = vpop.f32.mrf.mxu0
        %v645 = vadd.f32 0.0, %v644
        %646 = vdwg.mxu0
        %v647 = vmul.f32 %v643, 0.125
        %v648 = vmul.f32 %v645, 0.125
        %v649 = vsel %vm579, %v647, -inf
        %650 = vmax.xlane.f32.xlu0 %v649
        %v651 = vpop.xlane.xlu0 %650
        %v652 = vsel %vm579, %v648, -inf
        %653 = vmax.xlane.f32.xlu0 %v652
        %v654 = vpop.xlane.xlu0 %653
        %v655 = vsub.f32 %v647, %v651
        %v656 = vsub.f32 %v648, %v654
        %v657 = vmul.f32 %v655, 1.442695
        %v658 = vpow.pop %v657
        %v659 = vmul.f32 %v656, 1.442695
        %v660 = vpow.pop %v659
        %v661 = vsel %vm579, %v658, 0.0
        %662 = vadd.xlane.f32.xlu0 %v661
        %v663 = vpop.xlane.xlu0 %662
        %v664 = vsel %vm579, %v660, 0.0
        %665 = vadd.xlane.f32.xlu0 %v664
        %v666 = vpop.xlane.xlu0 %665
        %v667 = vrcp.pop %v663
        %v668 = vrcp.pop %v666
        %v669 = vmul.f32 %v658, %v667
        %v670 = vmul.f32 %v660, %v668
        %v671 = vpack.c.bf16 %v670, %v669
        %673 = vrot.lane.b32.xlu0 %v603, 64
        %v674 = vpop.permute.xlu0 %673
        %v677 = vsel %vm579, %v671, 0
        %679 = vmatpush.bf16.msra.mxu0 0
        %680 = vmatpush.bf16.msra.mxu0 0
        %681 = vmatpush.bf16.msra.mxu0 0
        %682 = vmatpush.bf16.msra.mxu0 0
        %683 = vmatpush.bf16.msra.mxu0 0
        %684 = vmatpush.bf16.msra.mxu0 0
        %685 = vmatpush.bf16.msra.mxu0 0
        %686 = vmatpush.bf16.msra.mxu0 %v674
        %687 = vmatmul.bf16.gmra.mxu0 %v677
        %v688 = vpop.f32.mrf.mxu0
        %v689 = vadd.f32 0.0, %v688
        %v690 = vpop.f32.mrf.mxu0
        %v691 = vadd.f32 0.0, %v690
        %692 = vdwg.mxu0
        %695 = vrot.lane.b32.xlu0 %v689, 64
        %v696 = vpop.permute.xlu0 %695
        %697 = vrot.lane.b32.xlu0 %v691, 64
        %v698 = vpop.permute.xlu0 %697
        %v701 = vsel %vm556, %v617, %v696
        %v702 = vsel %vm556, %v619, %v698
        %v703 = vpack.c.bf16 %v702, %v701
        %v704 = vld [vmem:[%s4] sm:$0xf]
        %v705 = vld [vmem:[%s4 + $0x4] sm:$0xf]
        %v706 = vld [vmem:[%s4 + $0x8] sm:$0xf]
        %v707 = vld [vmem:[%s4 + $0xc] sm:$0xf]
        %v708 = vld [vmem:[%s4 + $0x10] sm:$0xf]
        %v709 = vld [vmem:[%s4 + $0x14] sm:$0xf]
        %v710 = vld [vmem:[%s4 + $0x18] sm:$0xf]
        %v711 = vld [vmem:[%s4 + $0x1c] sm:$0xf]
        %v712 = vld [vmem:[%s4 + $0x20] sm:$0xf]
        %v713 = vld [vmem:[%s4 + $0x24] sm:$0xf]
        %v714 = vld [vmem:[%s4 + $0x28] sm:$0xf]
        %v715 = vld [vmem:[%s4 + $0x2c] sm:$0xf]
        %v716 = vld [vmem:[%s4 + $0x30] sm:$0xf]
        %v717 = vld [vmem:[%s4 + $0x34] sm:$0xf]
        %v718 = vld [vmem:[%s4 + $0x38] sm:$0xf]
        %v719 = vld [vmem:[%s4 + $0x3c] sm:$0xf]
        %v720 = vld [vmem:[%s5] sm:$0x1]
        %v722 = vperm.slane %v720, 0
        %v740 = vunpack.c.l.b16 %v704
        %v741 = vunpack.c.l.b16 %v705
        %v742 = vunpack.c.l.b16 %v706
        %v743 = vunpack.c.l.b16 %v707
        %v744 = vunpack.c.l.b16 %v708
        %v745 = vunpack.c.l.b16 %v709
        %v746 = vunpack.c.l.b16 %v710
        %v747 = vunpack.c.l.b16 %v711
        %v748 = vunpack.c.l.b16 %v712
        %v749 = vunpack.c.l.b16 %v713
        %v750 = vunpack.c.l.b16 %v714
        %v751 = vunpack.c.l.b16 %v715
        %v752 = vunpack.c.l.b16 %v716
        %v753 = vunpack.c.l.b16 %v717
        %v754 = vunpack.c.l.b16 %v718
        %v755 = vunpack.c.l.b16 %v719
        %v756 = vpack.c.b16 %v741, %v740
        %v757 = vpack.c.b16 %v743, %v742
        %v758 = vpack.c.b16 %v745, %v744
        %v759 = vpack.c.b16 %v747, %v746
        %v760 = vpack.c.b16 %v749, %v748
        %v761 = vpack.c.b16 %v751, %v750
        %v762 = vpack.c.b16 %v753, %v752
        %v763 = vpack.c.b16 %v755, %v754
        %772 = vmatpush.bf16.msra.mxu0 %v763
        %773 = vmatpush.bf16.msra.mxu0 %v762
        %774 = vmatpush.bf16.msra.mxu0 %v761
        %775 = vmatpush.bf16.msra.mxu0 %v760
        %776 = vmatpush.bf16.msra.mxu0 %v759
        %777 = vmatpush.bf16.msra.mxu0 %v758
        %778 = vmatpush.bf16.msra.mxu0 %v757
        %779 = vmatpush.bf16.msra.mxu0 %v756
        %780 = vmatmul.bf16.gmra.mxu0 %v703
        %v781 = vpop.f32.mrf.mxu0
        %v782 = vadd.f32 %v722, %v781
        %v783 = vpop.f32.mrf.mxu0
        %v784 = vadd.f32 %v722, %v783
        %785 = vdwg.mxu0
        %786 = vst [vmem:[%s288] sm:$0xff] %v782
        %787 = vst [vmem:[%s288 + $0x8] sm:$0xff] %v784
        %s788 = sand.u32 %s163, 1
        %s789 = scalar_lea.sflag [#allocation4], %s788
        %s790 = sand.u32 %s163, 1
        %s791 = smul.addr %s790, 16
        %s792 = scalar_lea.vmem [#allocation7], %s791
        // Predicated region
        $region53: #{forward.4} parent=43 // pred_check
          %p793 = pneg %p173
        $region54: #{forward.4} parent=43 // pred_check_branch
          %795 = sbr.rel (%p793) target = $region56
        $region55: #{forward.4} parent=43 // pred_region
          %797 = vsyncadd %s789, 0
          %s798 = smul.addr %s24, 2
          %s799 = smul.addr %s798, 8
          %s800 = scalar_lea.hbm %s6, %s799
          %s801 = sshll.u32 %s792, 4
          %s802 = int_to_ptr.vmem [resolvable:$true] %s801
          %s803 = sshll.u32 %s800, 4
          %s804 = int_to_ptr.hbm [resolvable:$true] %s803
          %809 = dma.vmem_to_hbm [thread:$0]  %s802, 256, %s804, %s789, 128, 128, 8
        $region56: #{forward.4} parent=43 // pred_fallthru
          _
      $region44: #{forward.4} parent=5 // pred_fallthru
        _
      %p810 = scmp.le.s32.totalorder 2, %s19
      // Predicated region
      $region57: #{forward.4} parent=5 // pred_check
        %p811 = pneg %p810
      $region58: #{forward.4} parent=5 // pred_check_branch
        %813 = sbr.rel (%p811) target = $region60
      $region59: #{forward.4} parent=5 // pred_region
        %s814 = ssub.s32 %s19, 2
        // Predicated region
        $region61: #{forward.4} parent=59 // pred_check
          %p815 = pneg %p179
        $region62: #{forward.4} parent=59 // pred_check_branch
          %817 = sbr.rel (%p815) target = $region64
        $region63: #{forward.4} parent=59 // pred_region
          %s818 = sand.u32 %s164, 1
          %s819 = scalar_lea.sflag [#allocation4], %s818
          %s820 = sand.u32 %s164, 1
          %s821 = smul.addr %s820, 16
          %s822 = scalar_lea.vmem [#allocation7], %s821
          %824 = dma.done %s819, 256
        $region64: #{forward.4} parent=59 // pred_fallthru
          _
      $region60: #{forward.4} parent=5 // pred_fallthru
        _
    $region6: #{forward.4} parent=1 // loop_footer
      %s23 = sadd.s32 1, %s19
    $region7: #{forward.4} parent=1 // loop_footer_branch
      %18 = sbr.rel target = $region3
    $region8: #{forward.4} parent=1 // loop_exit
      _
    %825 = vsyncpa [#allocation3], 1
    %s826 = scalar_lea.sflag [#allocation3], 1
    %827 = vsyncpa %s826, 1
    %828 = vsyncpa [#allocation6], 1
    %829 = vsyncpa [#allocation4], 1
    %s830 = scalar_lea.sflag [#allocation4], 1
    %831 = vsyncpa %s830, 1

// kernel: forward.3
$region0: #{forward.3}
  #allocation0 [shape = 'u32[]', space=smem, size = 0x4, offset = 0x4, fixed_abs, tag = 'smem constant byte address 0x4 - core index']
  #allocation1 [shape = 'u32[72,128]{1,0:T(1,128)}', space=vmem, size = 0x9000, scoped, tag = 'internal scratch']
  %s0 = inlined_call_operand.hbm [shape: f32[32,128], index: 0, kind: input, shape index: {}]
  %s1 = inlined_call_operand.vmem [shape: f32[1,128], index: 1, kind: input, shape index: {}]
  %s2 = inlined_call_operand.vmem [shape: f32[1,128], index: 2, kind: input, shape index: {}]
  %s3 = inlined_call_operand.hbm [shape: bf16[128,256], index: 3, kind: input, shape index: {}]
  %s4 = inlined_call_operand.vmem [shape: f32[1,256], index: 4, kind: input, shape index: {}]
  %s5 = inlined_call_operand.hbm [shape: bf16[256,128], index: 5, kind: input, shape index: {}]
  %s6 = inlined_call_operand.vmem [shape: f32[1,128], index: 6, kind: input, shape index: {}]
  %s7 = inlined_call_operand.hbm [shape: f32[32,128], index: 7, kind: output, shape index: {}]
  %s8 = sld [smem:[#allocation0]]
  $region50: #{forward.3} parent=0
    _
  %s10 = ssub.s32 1, %s8
  %s11 = scalar_select 0, %s10, %s8
  $region1: #{forward.3} parent=0
    #allocation2 [shape = 'u8[16384]{0}', space=vmem, size = 0x4000, scoped, tag = 'input window, operand 0, single buffered']
    #allocation3 [shape = 's32[1]{0}', space=sflag, size = 0x4, scoped, tag = 'scoped memory for forward.3']
    #allocation4 [shape = 's32[1]{0}', space=sflag, size = 0x4, scoped, tag = 'scoped memory for forward.3']
    #allocation5 [shape = 'u8[65536]{0}', space=vmem, size = 0x10000, scoped, tag = 'input window, operand 3, single buffered']
    #allocation6 [shape = 's32[1]{0}', space=sflag, size = 0x4, scoped, tag = 'scoped memory for forward.3']
    #allocation7 [shape = 'u8[65536]{0}', space=vmem, size = 0x10000, scoped, tag = 'input window, operand 5, single buffered']
    #allocation8 [shape = 'u8[16384]{0}', space=vmem, size = 0x4000, scoped, tag = 'output window, operand 0, single buffered']
    %12 = vsyncpa [#allocation3], 0
    %13 = vsyncpa [#allocation6], 0
    %14 = vsyncpa [#allocation4], 0
    // Predicated region
    $region2: #{forward.3} parent=1 // pred_check
      _
    $region3: #{forward.3} parent=1 // pred_check_branch
      %16 = sbr.rel (0) target = $region5
    $region4: #{forward.3} parent=1 // pred_region
      %18 = vsyncadd [#allocation3], 0
      %s19 = sshll.u32 %s0, 4
      %s20 = int_to_ptr.hbm [resolvable:$true] %s19
      %s21 = sshll.u32 [#allocation2], 4
      %s22 = int_to_ptr.vmem [resolvable:$true] %s21
      %27 = dma.hbm_to_vmem [thread:$0]  %s20, 512, %s22, [#allocation3], 128, 128, 8
    $region5: #{forward.3} parent=1 // pred_fallthru
      _
    // Predicated region
    $region6: #{forward.3} parent=1 // pred_check
      _
    $region7: #{forward.3} parent=1 // pred_check_branch
      %29 = sbr.rel (0) target = $region9
    $region8: #{forward.3} parent=1 // pred_region
      _
    $region9: #{forward.3} parent=1 // pred_fallthru
      _
    // Predicated region
    $region10: #{forward.3} parent=1 // pred_check
      _
    $region11: #{forward.3} parent=1 // pred_check_branch
      %31 = sbr.rel (0) target = $region13
    $region12: #{forward.3} parent=1 // pred_region
      _
    $region13: #{forward.3} parent=1 // pred_fallthru
      _
    // Predicated region
    $region14: #{forward.3} parent=1 // pred_check
      _
    $region15: #{forward.3} parent=1 // pred_check_branch
      %33 = sbr.rel (0) target = $region17
    $region16: #{forward.3} parent=1 // pred_region
      %35 = vsyncadd [#allocation6], 0
      %s36 = sshll.u32 %s3, 4
      %s37 = int_to_ptr.hbm [resolvable:$true] %s36
      %s38 = sshll.u32 [#allocation5], 4
      %s39 = int_to_ptr.vmem [resolvable:$true] %s38
      %44 = dma.hbm_to_vmem [thread:$0]  %s37, 2048, %s39, [#allocation6], 128, 128, 8
    $region17: #{forward.3} parent=1 // pred_fallthru
      _
    // Predicated region
    $region18: #{forward.3} parent=1 // pred_check
      _
    $region19: #{forward.3} parent=1 // pred_check_branch
      %46 = sbr.rel (0) target = $region21
    $region20: #{forward.3} parent=1 // pred_region
      _
    $region21: #{forward.3} parent=1 // pred_fallthru
      _
    // Predicated region
    $region22: #{forward.3} parent=1 // pred_check
      _
    $region23: #{forward.3} parent=1 // pred_check_branch
      %48 = sbr.rel (0) target = $region25
    $region24: #{forward.3} parent=1 // pred_region
      %50 = vsyncadd [#allocation6], 0
      %s51 = sshll.u32 %s5, 4
      %s52 = int_to_ptr.hbm [resolvable:$true] %s51
      %s53 = sshll.u32 [#allocation7], 4
      %s54 = int_to_ptr.vmem [resolvable:$true] %s53
      %59 = dma.hbm_to_vmem [thread:$0]  %s52, 2048, %s54, [#allocation6], 64, 64, 4
    $region25: #{forward.3} parent=1 // pred_fallthru
      _
    // Predicated region
    $region26: #{forward.3} parent=1 // pred_check
      _
    $region27: #{forward.3} parent=1 // pred_check_branch
      %61 = sbr.rel (0) target = $region29
    $region28: #{forward.3} parent=1 // pred_region
      _
    $region29: #{forward.3} parent=1 // pred_fallthru
      _
    // Predicated region
    $region30: #{forward.3} parent=1 // pred_check
      _
    $region31: #{forward.3} parent=1 // pred_check_branch
      %63 = sbr.rel (0) target = $region33
    $region32: #{forward.3} parent=1 // pred_region
      %65 = dma.done [#allocation3], 512
    $region33: #{forward.3} parent=1 // pred_fallthru
      _
    // Predicated region
    $region34: #{forward.3} parent=1 // pred_check
      _
    $region35: #{forward.3} parent=1 // pred_check_branch
      %67 = sbr.rel (0) target = $region37
    $region36: #{forward.3} parent=1 // pred_region
      %69 = dma.done [#allocation6], 2048
    $region37: #{forward.3} parent=1 // pred_fallthru
      _
    // Predicated region
    $region38: #{forward.3} parent=1 // pred_check
      _
    $region39: #{forward.3} parent=1 // pred_check_branch
      %71 = sbr.rel (0) target = $region41
    $region40: #{forward.3} parent=1 // pred_region
      %73 = dma.done [#allocation6], 2048
    $region41: #{forward.3} parent=1 // pred_fallthru
      _
    %v74 = vld [vmem:[#allocation2] sm:$0xff]
    %v75 = vld [vmem:[#allocation2 + $0x8] sm:$0xff]
    %v76 = vld [vmem:[#allocation2 + $0x10] sm:$0xff]
    %v77 = vld [vmem:[#allocation2 + $0x18] sm:$0xff]
    %v78 = vld [vmem:[%s1] sm:$0x1]
    %v79 = vld [vmem:[%s2] sm:$0x1]
    %80 = vadd.xlane.f32.xlu0 %v74
    %v81 = vpop.xlane.xlu0 %80
    %82 = vadd.xlane.f32.xlu0 %v75
    %v83 = vpop.xlane.xlu0 %82
    %84 = vadd.xlane.f32.xlu0 %v76
    %v85 = vpop.xlane.xlu0 %84
    %86 = vadd.xlane.f32.xlu0 %v77
    %v87 = vpop.xlane.xlu0 %86
    %v88 = vrcp.pop 128.0
    %v89 = vmul.f32 128.0, %v88
    %v90 = vsub.f32 1.0, %v89
    %v91 = vmul.f32 %v88, %v90
    %v92 = vadd.f32 %v88, %v91
    %vm93 = vweird.f32 %v88
    %v94 = vsel %vm93, %v88, %v92
    %v95 = vmul.f32 %v81, %v94
    %v96 = vmul.f32 %v83, %v94
    %v97 = vmul.f32 %v85, %v94
    %v98 = vmul.f32 %v87, %v94
    %v99 = vsub.f32 %v74, %v95
    %v100 = vsub.f32 %v75, %v96
    %v101 = vsub.f32 %v76, %v97
    %v102 = vsub.f32 %v77, %v98
    %v103 = vmul.f32 %v99, %v99
    %v104 = vmul.f32 %v100, %v100
    %v105 = vmul.f32 %v101, %v101
    %v106 = vmul.f32 %v102, %v102
    %107 = vadd.xlane.f32.xlu0 %v103
    %v108 = vpop.xlane.xlu0 %107
    %109 = vadd.xlane.f32.xlu0 %v104
    %v110 = vpop.xlane.xlu0 %109
    %111 = vadd.xlane.f32.xlu0 %v105
    %v112 = vpop.xlane.xlu0 %111
    %113 = vadd.xlane.f32.xlu0 %v106
    %v114 = vpop.xlane.xlu0 %113
    %v115 = vmul.f32 %v108, %v94
    %v116 = vmul.f32 %v110, %v94
    %v117 = vmul.f32 %v112, %v94
    %v118 = vmul.f32 %v114, %v94
    %v119 = vadd.f32 %v115, 1e-05
    %v120 = vadd.f32 %v116, 1e-05
    %v121 = vadd.f32 %v117, 1e-05
    %v122 = vadd.f32 %v118, 1e-05
    %v123 = vrsqrt.pop %v119
    %v124 = vmul.f32 %v123, %v119
    %v125 = vmul.f32 %v124, %v123
    %v126 = vmul.f32 0.5, %v125
    %v127 = vsub.f32 1.5, %v126
    %v128 = vmul.f32 %v123, %v127
    %vm129 = vweird.f32 %v119
    %vm130 = vweird.f32 %v123
    %vm131 = vmor %vm129, %vm130
    %v132 = vsel %vm131, %v123, %v128
    %v133 = vrsqrt.pop %v120
    %v134 = vmul.f32 %v133, %v120
    %v135 = vmul.f32 %v134, %v133
    %v136 = vmul.f32 0.5, %v135
    %v137 = vsub.f32 1.5, %v136
    %v138 = vmul.f32 %v133, %v137
    %vm139 = vweird.f32 %v120
    %vm140 = vweird.f32 %v133
    %vm141 = vmor %vm139, %vm140
    %v142 = vsel %vm141, %v133, %v138
    %v143 = vrsqrt.pop %v121
    %v144 = vmul.f32 %v143, %v121
    %v145 = vmul.f32 %v144, %v143
    %v146 = vmul.f32 0.5, %v145
    %v147 = vsub.f32 1.5, %v146
    %v148 = vmul.f32 %v143, %v147
    %vm149 = vweird.f32 %v121
    %vm150 = vweird.f32 %v143
    %vm151 = vmor %vm149, %vm150
    %v152 = vsel %vm151, %v143, %v148
    %v153 = vrsqrt.pop %v122
    %v154 = vmul.f32 %v153, %v122
    %v155 = vmul.f32 %v154, %v153
    %v156 = vmul.f32 0.5, %v155
    %v157 = vsub.f32 1.5, %v156
    %v158 = vmul.f32 %v153, %v157
    %vm159 = vweird.f32 %v122
    %vm160 = vweird.f32 %v153
    %vm161 = vmor %vm159, %vm160
    %v162 = vsel %vm161, %v153, %v158
    %v163 = vmul.f32 %v99, %v132
    %v164 = vmul.f32 %v100, %v142
    %v165 = vmul.f32 %v101, %v152
    %v166 = vmul.f32 %v102, %v162
    %v168 = vperm.slane %v78, 0
    %v170 = vmul.f32 %v163, %v168
    %v171 = vmul.f32 %v164, %v168
    %v172 = vmul.f32 %v165, %v168
    %v173 = vmul.f32 %v166, %v168
    %v175 = vperm.slane %v79, 0
    %v177 = vadd.f32 %v170, %v175
    %v178 = vadd.f32 %v171, %v175
    %v179 = vadd.f32 %v172, %v175
    %v180 = vadd.f32 %v173, %v175
    %v181 = vpack.c.bf16 %v178, %v177
    %v182 = vpack.c.bf16 %v180, %v179
    %v183 = vld [vmem:[#allocation5] sm:$0xff]
    %v184 = vld [vmem:[#allocation5 + $0x8] sm:$0xff]
    %v185 = vld [vmem:[#allocation5 + $0x10] sm:$0xff]
    %v186 = vld [vmem:[#allocation5 + $0x18] sm:$0xff]
    %v187 = vld [vmem:[#allocation5 + $0x20] sm:$0xff]
    %v188 = vld [vmem:[#allocation5 + $0x28] sm:$0xff]
    %v189 = vld [vmem:[#allocation5 + $0x30] sm:$0xff]
    %v190 = vld [vmem:[#allocation5 + $0x38] sm:$0xff]
    %v191 = vld [vmem:[#allocation5 + $0x40] sm:$0xff]
    %v192 = vld [vmem:[#allocation5 + $0x48] sm:$0xff]
    %v193 = vld [vmem:[#allocation5 + $0x50] sm:$0xff]
    %v194 = vld [vmem:[#allocation5 + $0x58] sm:$0xff]
    %v195 = vld [vmem:[#allocation5 + $0x60] sm:$0xff]
    %v196 = vld [vmem:[#allocation5 + $0x68] sm:$0xff]
    %v197 = vld [vmem:[#allocation5 + $0x70] sm:$0xff]
    %v198 = vld [vmem:[#allocation5 + $0x78] sm:$0xff]
    %v199 = vld [vmem:[%s4] sm:$0x3]
    %v201 = vperm.slane %v199, 0
    %v202 = vperm.slane %v199, 1
    %v221 = vunpack.c.l.b16 %v183
    %v222 = vunpack.c.h.b16 %v183
    %v223 = vunpack.c.l.b16 %v184
    %v224 = vunpack.c.h.b16 %v184
    %v225 = vunpack.c.l.b16 %v185
    %v226 = vunpack.c.h.b16 %v185
    %v227 = vunpack.c.l.b16 %v186
    %v228 = vunpack.c.h.b16 %v186
    %v229 = vunpack.c.l.b16 %v187
    %v230 = vunpack.c.h.b16 %v187
    %v231 = vunpack.c.l.b16 %v188
    %v232 = vunpack.c.h.b16 %v188
    %v233 = vunpack.c.l.b16 %v189
    %v234 = vunpack.c.h.b16 %v189
    %v235 = vunpack.c.l.b16 %v190
    %v236 = vunpack.c.h.b16 %v190
    %v237 = vunpack.c.l.b16 %v191
    %v238 = vunpack.c.h.b16 %v191
    %v239 = vunpack.c.l.b16 %v192
    %v240 = vunpack.c.h.b16 %v192
    %v241 = vunpack.c.l.b16 %v193
    %v242 = vunpack.c.h.b16 %v193
    %v243 = vunpack.c.l.b16 %v194
    %v244 = vunpack.c.h.b16 %v194
    %v245 = vunpack.c.l.b16 %v195
    %v246 = vunpack.c.h.b16 %v195
    %v247 = vunpack.c.l.b16 %v196
    %v248 = vunpack.c.h.b16 %v196
    %v249 = vunpack.c.l.b16 %v197
    %v250 = vunpack.c.h.b16 %v197
    %v251 = vunpack.c.l.b16 %v198
    %v252 = vunpack.c.h.b16 %v198
    %v253 = vpack.c.b16 %v223, %v221
    %v254 = vpack.c.b16 %v224, %v222
    %v255 = vpack.c.b16 %v227, %v225
    %v256 = vpack.c.b16 %v228, %v226
    %v257 = vpack.c.b16 %v231, %v229
    %v258 = vpack.c.b16 %v232, %v230
    %v259 = vpack.c.b16 %v235, %v233
    %v260 = vpack.c.b16 %v236, %v234
    %v261 = vpack.c.b16 %v239, %v237
    %v262 = vpack.c.b16 %v240, %v238
    %v263 = vpack.c.b16 %v243, %v241
    %v264 = vpack.c.b16 %v244, %v242
    %v265 = vpack.c.b16 %v247, %v245
    %v266 = vpack.c.b16 %v248, %v246
    %v267 = vpack.c.b16 %v251, %v249
    %v268 = vpack.c.b16 %v252, %v250
    %285 = vmatpush.bf16.msra.mxu0 %v267
    %286 = vmatpush.bf16.msra.mxu0 %v265
    %287 = vmatpush.bf16.msra.mxu0 %v263
    %288 = vmatpush.bf16.msra.mxu0 %v261
    %289 = vmatpush.bf16.msra.mxu0 %v259
    %290 = vmatpush.bf16.msra.mxu0 %v257
    %291 = vmatpush.bf16.msra.mxu0 %v255
    %292 = vmatpush.bf16.msra.mxu0 %v253
    %293 = vmatmul.bf16.gmra.mxu0 %v181
    %v294 = vpop.f32.mrf.mxu0
    %v295 = vadd.f32 %v201, %v294
    %v296 = vpop.f32.mrf.mxu0
    %v297 = vadd.f32 %v201, %v296
    %298 = vmatmul.bf16.gmra.mxu0 %v182
    %v299 = vpop.f32.mrf.mxu0
    %v300 = vadd.f32 %v201, %v299
    %v301 = vpop.f32.mrf.mxu0
    %v302 = vadd.f32 %v201, %v301
    %303 = vdwg.mxu0
    %304 = vmatpush.bf16.msra.mxu0 %v268
    %305 = vmatpush.bf16.msra.mxu0 %v266
    %306 = vmatpush.bf16.msra.mxu0 %v264
    %307 = vmatpush.bf16.msra.mxu0 %v262
    %308 = vmatpush.bf16.msra.mxu0 %v260
    %309 = vmatpush.bf16.msra.mxu0 %v258
    %310 = vmatpush.bf16.msra.mxu0 %v256
    %311 = vmatpush.bf16.msra.mxu0 %v254
    %312 = vmatmul.bf16.gmra.mxu0 %v181
    %v313 = vpop.f32.mrf.mxu0
    %v314 = vadd.f32 %v202, %v313
    %v315 = vpop.f32.mrf.mxu0
    %v316 = vadd.f32 %v202, %v315
    %317 = vmatmul.bf16.gmra.mxu0 %v182
    %v318 = vpop.f32.mrf.mxu0
    %v319 = vadd.f32 %v202, %v318
    %v320 = vpop.f32.mrf.mxu0
    %v321 = vadd.f32 %v202, %v320
    %322 = vdwg.mxu0
    %v323 = vmul.f32 %v295, 0.5
    %v324 = vmul.f32 %v314, 0.5
    %v325 = vmul.f32 %v297, 0.5
    %v326 = vmul.f32 %v316, 0.5
    %v327 = vmul.f32 %v300, 0.5
    %v328 = vmul.f32 %v319, 0.5
    %v329 = vmul.f32 %v302, 0.5
    %v330 = vmul.f32 %v321, 0.5
    %v331 = vmul.f32 %v295, %v295
    %v332 = vmul.f32 %v314, %v314
    %v333 = vmul.f32 %v297, %v297
    %v334 = vmul.f32 %v316, %v316
    %v335 = vmul.f32 %v300, %v300
    %v336 = vmul.f32 %v319, %v319
    %v337 = vmul.f32 %v302, %v302
    %v338 = vmul.f32 %v321, %v321
    %v339 = vmul.f32 %v331, %v295
    %v340 = vmul.f32 %v332, %v314
    %v341 = vmul.f32 %v333, %v297
    %v342 = vmul.f32 %v334, %v316
    %v343 = vmul.f32 %v335, %v300
    %v344 = vmul.f32 %v336, %v319
    %v345 = vmul.f32 %v337, %v302
    %v346 = vmul.f32 %v338, %v321
    %v347 = vmul.f32 %v339, 0.044715
    %v348 = vmul.f32 %v340, 0.044715
    %v349 = vmul.f32 %v341, 0.044715
    %v350 = vmul.f32 %v342, 0.044715
    %v351 = vmul.f32 %v343, 0.044715
    %v352 = vmul.f32 %v344, 0.044715
    %v353 = vmul.f32 %v345, 0.044715
    %v354 = vmul.f32 %v346, 0.044715
    %v355 = vadd.f32 %v295, %v347
    %v356 = vadd.f32 %v314, %v348
    %v357 = vadd.f32 %v297, %v349
    %v358 = vadd.f32 %v316, %v350
    %v359 = vadd.f32 %v300, %v351
    %v360 = vadd.f32 %v319, %v352
    %v361 = vadd.f32 %v302, %v353
    %v362 = vadd.f32 %v321, %v354
    %v363 = vmul.f32 %v355, 0.7978846
    %v364 = vmul.f32 %v356, 0.7978846
    %v365 = vmul.f32 %v357, 0.7978846
    %v366 = vmul.f32 %v358, 0.7978846
    %v367 = vmul.f32 %v359, 0.7978846
    %v368 = vmul.f32 %v360, 0.7978846
    %v369 = vmul.f32 %v361, 0.7978846
    %v370 = vmul.f32 %v362, 0.7978846
    %v371 = vtanh.pop %v363
    %v372 = vtanh.pop %v364
    %v373 = vtanh.pop %v365
    %v374 = vtanh.pop %v366
    %v375 = vtanh.pop %v367
    %v376 = vtanh.pop %v368
    %v377 = vtanh.pop %v369
    %v378 = vtanh.pop %v370
    %v379 = vadd.f32 %v371, 1.0
    %v380 = vadd.f32 %v372, 1.0
    %v381 = vadd.f32 %v373, 1.0
    %v382 = vadd.f32 %v374, 1.0
    %v383 = vadd.f32 %v375, 1.0
    %v384 = vadd.f32 %v376, 1.0
    %v385 = vadd.f32 %v377, 1.0
    %v386 = vadd.f32 %v378, 1.0
    %v387 = vmul.f32 %v323, %v379
    %v388 = vmul.f32 %v324, %v380
    %v389 = vmul.f32 %v325, %v381
    %v390 = vmul.f32 %v326, %v382
    %v391 = vmul.f32 %v327, %v383
    %v392 = vmul.f32 %v328, %v384
    %v393 = vmul.f32 %v329, %v385
    %v394 = vmul.f32 %v330, %v386
    %v395 = vpack.c.bf16 %v389, %v387
    %v396 = vpack.c.bf16 %v390, %v388
    %v397 = vpack.c.bf16 %v393, %v391
    %v398 = vpack.c.bf16 %v394, %v392
    %v399 = vld [vmem:[#allocation7] sm:$0xf]
    %v400 = vld [vmem:[#allocation7 + $0x4] sm:$0xf]
    %v401 = vld [vmem:[#allocation7 + $0x8] sm:$0xf]
    %v402 = vld [vmem:[#allocation7 + $0xc] sm:$0xf]
    %v403 = vld [vmem:[#allocation7 + $0x10] sm:$0xf]
    %v404 = vld [vmem:[#allocation7 + $0x14] sm:$0xf]
    %v405 = vld [vmem:[#allocation7 + $0x18] sm:$0xf]
    %v406 = vld [vmem:[#allocation7 + $0x1c] sm:$0xf]
    %v407 = vld [vmem:[#allocation7 + $0x20] sm:$0xf]
    %v408 = vld [vmem:[#allocation7 + $0x24] sm:$0xf]
    %v409 = vld [vmem:[#allocation7 + $0x28] sm:$0xf]
    %v410 = vld [vmem:[#allocation7 + $0x2c] sm:$0xf]
    %v411 = vld [vmem:[#allocation7 + $0x30] sm:$0xf]
    %v412 = vld [vmem:[#allocation7 + $0x34] sm:$0xf]
    %v413 = vld [vmem:[#allocation7 + $0x38] sm:$0xf]
    %v414 = vld [vmem:[#allocation7 + $0x3c] sm:$0xf]
    %v415 = vld [vmem:[#allocation7 + $0x40] sm:$0xf]
    %v416 = vld [vmem:[#allocation7 + $0x44] sm:$0xf]
    %v417 = vld [vmem:[#allocation7 + $0x48] sm:$0xf]
    %v418 = vld [vmem:[#allocation7 + $0x4c] sm:$0xf]
    %v419 = vld [vmem:[#allocation7 + $0x50] sm:$0xf]
    %v420 = vld [vmem:[#allocation7 + $0x54] sm:$0xf]
    %v421 = vld [vmem:[#allocation7 + $0x58] sm:$0xf]
    %v422 = vld [vmem:[#allocation7 + $0x5c] sm:$0xf]
    %v423 = vld [vmem:[#allocation7 + $0x60] sm:$0xf]
    %v424 = vld [vmem:[#allocation7 + $0x64] sm:$0xf]
    %v425 = vld [vmem:[#allocation7 + $0x68] sm:$0xf]
    %v426 = vld [vmem:[#allocation7 + $0x6c] sm:$0xf]
    %v427 = vld [vmem:[#allocation7 + $0x70] sm:$0xf]
    %v428 = vld [vmem:[#allocation7 + $0x74] sm:$0xf]
    %v429 = vld [vmem:[#allocation7 + $0x78] sm:$0xf]
    %v430 = vld [vmem:[#allocation7 + $0x7c] sm:$0xf]
    %v431 = vld [vmem:[%s6] sm:$0x1]
    %v433 = vperm.slane %v431, 0
    %v467 = vunpack.c.l.b16 %v399
    %v468 = vunpack.c.l.b16 %v400
    %v469 = vunpack.c.l.b16 %v401
    %v470 = vunpack.c.l.b16 %v402
    %v471 = vunpack.c.l.b16 %v403
    %v472 = vunpack.c.l.b16 %v404
    %v473 = vunpack.c.l.b16 %v405
    %v474 = vunpack.c.l.b16 %v406
    %v475 = vunpack.c.l.b16 %v407
    %v476 = vunpack.c.l.b16 %v408
    %v477 = vunpack.c.l.b16 %v409
    %v478 = vunpack.c.l.b16 %v410
    %v479 = vunpack.c.l.b16 %v411
    %v480 = vunpack.c.l.b16 %v412
    %v481 = vunpack.c.l.b16 %v413
    %v482 = vunpack.c.l.b16 %v414
    %v483 = vunpack.c.l.b16 %v415
    %v484 = vunpack.c.l.b16 %v416
    %v485 = vunpack.c.l.b16 %v417
    %v486 = vunpack.c.l.b16 %v418
    %v487 = vunpack.c.l.b16 %v419
    %v488 = vunpack.c.l.b16 %v420
    %v489 = vunpack.c.l.b16 %v421
    %v490 = vunpack.c.l.b16 %v422
    %v491 = vunpack.c.l.b16 %v423
    %v492 = vunpack.c.l.b16 %v424
    %v493 = vunpack.c.l.b16 %v425
    %v494 = vunpack.c.l.b16 %v426
    %v495 = vunpack.c.l.b16 %v427
    %v496 = vunpack.c.l.b16 %v428
    %v497 = vunpack.c.l.b16 %v429
    %v498 = vunpack.c.l.b16 %v430
    %v499 = vpack.c.b16 %v468, %v467
    %v500 = vpack.c.b16 %v470, %v469
    %v501 = vpack.c.b16 %v472, %v471
    %v502 = vpack.c.b16 %v474, %v473
    %v503 = vpack.c.b16 %v476, %v475
    %v504 = vpack.c.b16 %v478, %v477
    %v505 = vpack.c.b16 %v480, %v479
    %v506 = vpack.c.b16 %v482, %v481
    %v507 = vpack.c.b16 %v484, %v483
    %v508 = vpack.c.b16 %v486, %v485
    %v509 = vpack.c.b16 %v488, %v487
    %v510 = vpack.c.b16 %v490, %v489
    %v511 = vpack.c.b16 %v492, %v491
    %v512 = vpack.c.b16 %v494, %v493
    %v513 = vpack.c.b16 %v496, %v495
    %v514 = vpack.c.b16 %v498, %v497
    %531 = vmatpush.bf16.msra.mxu0 %v506
    %532 = vmatpush.bf16.msra.mxu0 %v505
    %533 = vmatpush.bf16.msra.mxu0 %v504
    %534 = vmatpush.bf16.msra.mxu0 %v503
    %535 = vmatpush.bf16.msra.mxu0 %v502
    %536 = vmatpush.bf16.msra.mxu0 %v501
    %537 = vmatpush.bf16.msra.mxu0 %v500
    %538 = vmatpush.bf16.msra.mxu0 %v499
    %539 = vmatmul.bf16.gmra.mxu0 %v395
    %v540 = vpop.f32.mrf.mxu0
    %v541 = vadd.f32 %v433, %v540
    %v542 = vpop.f32.mrf.mxu0
    %v543 = vadd.f32 %v433, %v542
    %544 = vmatmul.bf16.gmra.mxu0 %v397
    %v545 = vpop.f32.mrf.mxu0
    %v546 = vadd.f32 %v433, %v545
    %v547 = vpop.f32.mrf.mxu0
    %v548 = vadd.f32 %v433, %v547
    %549 = vdwg.mxu0
    %550 = vmatpush.bf16.msra.mxu0 %v514
    %551 = vmatpush.bf16.msra.mxu0 %v513
    %552 = vmatpush.bf16.msra.mxu0 %v512
    %553 = vmatpush.bf16.msra.mxu0 %v511
    %554 = vmatpush.bf16.msra.mxu0 %v510
    %555 = vmatpush.bf16.msra.mxu0 %v509
    %556 = vmatpush.bf16.msra.mxu0 %v508
    %557 = vmatpush.bf16.msra.mxu0 %v507
    %558 = vmatmul.bf16.gmra.mxu0 %v396
    %v559 = vpop.f32.mrf.mxu0
    %v560 = vadd.f32 %v541, %v559
    %v561 = vpop.f32.mrf.mxu0
    %v562 = vadd.f32 %v543, %v561
    %563 = vmatmul.bf16.gmra.mxu0 %v398
    %v564 = vpop.f32.mrf.mxu0
    %v565 = vadd.f32 %v546, %v564
    %v566 = vpop.f32.mrf.mxu0
    %v567 = vadd.f32 %v548, %v566
    %568 = vdwg.mxu0
    %569 = vst [vmem:[#allocation8] sm:$0xff] %v560
    %570 = vst [vmem:[#allocation8 + $0x8] sm:$0xff] %v562
    %571 = vst [vmem:[#allocation8 + $0x10] sm:$0xff] %v565
    %572 = vst [vmem:[#allocation8 + $0x18] sm:$0xff] %v567
    // Predicated region
    $region42: #{forward.3} parent=1 // pred_check
      _
    $region43: #{forward.3} parent=1 // pred_check_branch
      %574 = sbr.rel (0) target = $region45
    $region44: #{forward.3} parent=1 // pred_region
      %576 = vsyncadd [#allocation4], 0
      %s577 = sshll.u32 [#allocation8], 4
      %s578 = int_to_ptr.vmem [resolvable:$true] %s577
      %s579 = sshll.u32 %s7, 4
      %s580 = int_to_ptr.hbm [resolvable:$true] %s579
      %585 = dma.vmem_to_hbm [thread:$0]  %s578, 512, %s580, [#allocation4], 128, 128, 8
    $region45: #{forward.3} parent=1 // pred_fallthru
      _
    // Predicated region
    $region46: #{forward.3} parent=1 // pred_check
      _
    $region47: #{forward.3} parent=1 // pred_check_branch
      %587 = sbr.rel (0) target = $region49
    $region48: #{forward.3} parent=1 // pred_region
      %589 = dma.done [#allocation4], 512
    $region49: #{forward.3} parent=1 // pred_fallthru
      _
    %590 = vsyncpa [#allocation3], 1
    %591 = vsyncpa [#allocation6], 1
    %592 = vsyncpa [#allocation4], 1

</llo_original>
